<compile_context>
chip_gen: v7x
topology: tpu7x:2x2x1
jax: 0.10.0
libtpu: 0.0.40
codegen_flags: <defaults>
</compile_context>

<pallas_src>
import functools

import jax
import jax.numpy as jnp
from jax.experimental import pallas as pl
from jax.experimental.pallas import tpu as pltpu


def _grid_decoder_kernel(q_ref, g_ref, c_ref, o_ref, *,
                         d_size, h_size, w_size, s_total, bf16_weights):
    """One (split, batch, query-tile, spatial-tile) grid step.

    q_ref : [3, TN]  f32        query points, rows = (x, y, z) in [-1, 1]
    g_ref : [C, TS]  f32/bf16   spatial tile of the feature grid (channel-major)
    c_ref : [TS, 3]  f32        integer voxel coords (x, y, z) per flat spatial index
    o_ref : [C, TN]  f32        output tile, revisited (accumulated) across the S axis
    """
    s_i = pl.program_id(3)
    n_s = pl.num_programs(3)

    @pl.when(s_i == 0)
    def _init():
        o_ref[...] = jnp.zeros_like(o_ref)

    q = q_ref[...]                                            # [3, TN] f32
    wdt = jnp.bfloat16 if bf16_weights else jnp.float32

    def tent(axis, size):
        # Unnormalize (align_corners=True) + border clamp on the tiny [1, TN] row.
        cq = (q[axis:axis + 1, :] + 1.0) * (0.5 * (size - 1))
        cq = jnp.clip(cq, 0.0, float(size - 1))
        cs = c_ref[:, axis:axis + 1]                          # [TS, 1] f32 voxel coords
        if bf16_weights:
            # bf16 VALU path (v6e/v7x): split cq into integer + fractional parts so the
            # full-width [TS, TN] math stays accurate: integer coords (<= 256) and their
            # differences are exact in bf16, and the fractional part is < 1 so its
            # rounding error is ~2^-9 regardless of the grid size.
            c0 = jnp.floor(cq)
            frac = (cq - c0).astype(wdt)                      # [1, TN]
            d = (cs.astype(wdt) - c0.astype(wdt)) - frac      # [TS, TN] bf16
        else:
            d = cs - cq                                       # [TS, TN] f32 (v5e path)
        return jnp.maximum(1.0 - jnp.abs(d), 0.0)             # 1-D tent weight

    wx = tent(0, w_size)
    wy = tent(1, h_size)
    wz = tent(2, d_size)
    weights = (wx * wy * wz).astype(jnp.bfloat16)             # [TS, TN] bf16 for the MXU

    g = g_ref[...].astype(jnp.bfloat16)                       # [C, TS]
    ts_blk = g.shape[1]
    if s_total % ts_blk != 0:
        # Ragged final spatial tile: zero the out-of-range columns so stale VMEM
        # (possibly NaN) cannot leak into the accumulation.  The tent weights there are
        # already exactly zero (coord table padded with an off-grid sentinel), so this
        # mask only has to sanitize g.  Only emitted when S % TS != 0.
        blk = pl.program_id(0) * n_s + s_i                    # global spatial block idx
        lane = jax.lax.broadcasted_iota(jnp.int32, (1, ts_blk), 1) + blk * ts_blk
        g = jnp.where(lane < s_total, g, jnp.zeros_like(g))

    # Gather-as-matmul on the MXU: [C, TS] @ [TS, TN] -> [C, TN], f32 accumulation.
    upd = jnp.dot(g, weights, preferred_element_type=jnp.float32)
    o_ref[...] = o_ref[...] + upd


def _device_kind():
    try:
        return jax.devices()[0].device_kind.lower()
    except Exception:
        return ""


def _bf16_valu(kind):
    # v6e / v7x VALUs support bf16; v5e (and older) do not.
    return any(t in kind for t in ("v6", "v7", "7x"))


def _vmem_budget_bytes(kind):
    phys = None
    try:
        phys = int(pltpu.get_tpu_info().vmem_capacity_bytes)
    except Exception:
        phys = None
    if phys is None:
        # 128 MiB on v5e/v6e; assume the conservative 64 MiB (v7x) otherwise.
        phys = (128 << 20) if ("v5" in kind or "v6" in kind) else (64 << 20)
    return max(32 << 20, min(phys - (20 << 20), 100 << 20))


def grid_decoder(query_points, feature_grid, *, normalize=True,
                 tn=None, ts=None, weight_dtype=None):
    """query_points: [B, N, 3] in [-1, 1] (x, y, z); feature_grid: [B, C, D, H, W].

    Returns [B, N, C] float32, matching
      F.grid_sample(grid, q[:, :, None, None], padding_mode='border',
                    align_corners=True, mode='bilinear').squeeze(-1).squeeze(-1).transpose(1, 2)
    with optional L2 normalization over the channel axis.
    """
    B, C, D, H, W = feature_grid.shape
    assert query_points.shape[0] == B and query_points.shape[-1] == 3
    N = query_points.shape[1]
    S = D * H * W

    kind = _device_kind()
    budget = _vmem_budget_bytes(kind)

    if weight_dtype is None:
        bf16_weights = _bf16_valu(kind) and max(D, H, W) <= 256
    else:
        bf16_weights = jnp.dtype(weight_dtype) == jnp.dtype(jnp.bfloat16)

    # ---- tile sizes (generation-aware defaults, auto-shrunk to the VMEM budget) ----
    big_vmem = budget >= (80 << 20)
    ts_req = int(ts) if ts is not None else (8192 if big_vmem else 4096)
    tn_req = int(tn) if tn is not None else 256

    n_pad128 = max(128, -(-N // 128) * 128)
    tn_eff = max(128, (min(tn_req, n_pad128) // 128) * 128)
    n_pad = -(-N // tn_eff) * tn_eff
    nt = n_pad // tn_eff

    # Stream the grid as bf16 when it is re-streamed many times (or already bf16).
    if feature_grid.dtype == jnp.bfloat16:
        grid_flat = feature_grid.reshape(B, C, S)
    elif nt >= 3:
        grid_flat = feature_grid.astype(jnp.bfloat16).reshape(B, C, S)
    else:
        grid_flat = feature_grid.astype(jnp.float32).reshape(B, C, S)
    g_item = grid_flat.dtype.itemsize

    def est(ts_, tn_):
        per_elem = 8 if bf16_weights else 24        # live [TS,TN] intermediates
        return (2 * C * ts_ * g_item                # double-buffered grid block
                + 2 * ts_ * 128 * 4                 # (TS,3) coord block pads lanes to 128
                + 2 * 8 * tn_ * 4                   # query block
                + 2 * C * tn_ * 4                   # output block
                + per_elem * ts_ * tn_)

    if S <= ts_req and est(S, tn_eff) <= budget:
        TS = S
    else:
        TS = max(128, (min(ts_req, S) // 128) * 128)
        while est(TS, tn_eff) > budget and TS > 128:
            TS = max(128, (TS // 2) // 128 * 128)
    while est(TS, tn_eff) > budget and tn_eff > 128:
        tn_eff = max(128, tn_eff // 2)
        n_pad = -(-N // tn_eff) * tn_eff
        nt = n_pad // tn_eff

    num_s = -(-S // TS)
    s_pad = num_s * TS

    # Split the spatial reduction across a leading "parallel" axis when there is only a
    # single (batch, query-tile) combination, so v7x's two TensorCores both get work.
    # Harmless on single-core chips (one extra tiny partial-sum).
    n_split = 2 if (B * nt == 1 and num_s >= 2 and num_s % 2 == 0) else 1
    s_per_split = num_s // n_split

    # ---- small host-side prep (queries + voxel-coordinate table) ----
    q = query_points.astype(jnp.float32)
    if n_pad != N:
        q = jnp.pad(q, ((0, 0), (0, n_pad - N), (0, 0)))
    q_t = jnp.transpose(q, (0, 2, 1))                                    # [B, 3, n_pad]

    s_idx = jnp.arange(S, dtype=jnp.int32)
    coords = jnp.stack(
        [(s_idx % W).astype(jnp.float32),
         ((s_idx // W) % H).astype(jnp.float32),
         (s_idx // (W * H)).astype(jnp.float32)], axis=-1)               # [S, 3]
    if s_pad != S:
        # Off-grid sentinel -> tent weights exactly zero (and finite) in the padding.
        coords = jnp.pad(coords, ((0, s_pad - S), (0, 0)), constant_values=-2.0)

    kernel = functools.partial(
        _grid_decoder_kernel,
        d_size=D, h_size=H, w_size=W, s_total=S, bf16_weights=bf16_weights)

    out = pl.pallas_call(
        kernel,
        out_shape=jax.ShapeDtypeStruct((n_split, B, C, n_pad), jnp.float32),
        grid=(n_split, B, nt, s_per_split),
        in_specs=[
            pl.BlockSpec((None, 3, tn_eff), lambda p, b, n, s: (b, 0, n)),
            pl.BlockSpec((None, C, TS), lambda p, b, n, s: (b, 0, p * s_per_split + s)),
            pl.BlockSpec((TS, 3), lambda p, b, n, s: (p * s_per_split + s, 0)),
        ],
        out_specs=pl.BlockSpec((None, None, C, tn_eff), lambda p, b, n, s: (p, b, 0, n)),
        compiler_params=pltpu.CompilerParams(
            dimension_semantics=("parallel", "parallel", "parallel", "arbitrary"),
            vmem_limit_bytes=int(budget)),
    )(q_t, grid_flat, coords)

    # Tiny epilogue on the small output: sum split partials, transpose, un-pad, normalize.
    out = jnp.sum(out, axis=0)                                # [B, C, n_pad]
    out = jnp.transpose(out, (0, 2, 1))[:, :N, :]             # [B, N, C]
    if normalize:
        n2 = jnp.sum(out * out, axis=-1, keepdims=True)
        out = out * jax.lax.rsqrt(jnp.maximum(n2, 1e-14))     # == out / max(norm, 1e-7)
    return out


def _grid_decoder_ref(query_points, feature_grid, *, normalize=True):
    """Pure-JAX reference matching F.grid_sample(..., 'border', align_corners=True)."""
    B, C, D, H, W = feature_grid.shape
    q = query_points.astype(jnp.float32)

    def unnorm(c, size):
        return jnp.clip((c + 1.0) * 0.5 * (size - 1), 0.0, float(size - 1))

    ix = unnorm(q[..., 0], W)
    iy = unnorm(q[..., 1], H)
    iz = unnorm(q[..., 2], D)
    x0 = jnp.floor(ix)
    y0 = jnp.floor(iy)
    z0 = jnp.floor(iz)
    wx1 = ix - x0
    wy1 = iy - y0
    wz1 = iz - z0
    x0i = x0.astype(jnp.int32)
    y0i = y0.astype(jnp.int32)
    z0i = z0.astype(jnp.int32)
    x1i = jnp.minimum(x0i + 1, W - 1)
    y1i = jnp.minimum(y0i + 1, H - 1)
    z1i = jnp.minimum(z0i + 1, D - 1)

    b_idx = jnp.arange(B)[:, None]
    out = jnp.zeros((B, q.shape[1], C), jnp.float32)
    for zi, wz in ((z0i, 1.0 - wz1), (z1i, wz1)):
        for yi, wy in ((y0i, 1.0 - wy1), (y1i, wy1)):
            for xi, wx in ((x0i, 1.0 - wx1), (x1i, wx1)):
                val = feature_grid[b_idx, :, zi, yi, xi]       # [B, N, C]
                out = out + (wz * wy * wx)[..., None] * val
    if normalize:
        n = jnp.sqrt(jnp.sum(out * out, axis=-1, keepdims=True))
        out = out / jnp.maximum(n, 1e-7)
    return out


if __name__ == "__main__":
    key = jax.random.PRNGKey(0)
    k1, k2, k3, k4 = jax.random.split(key, 4)

    # Test 1: small cubic grid, normalize on, single spatial tile, auto weight dtype
    # (bf16 VALU path on v6e/v7x, f32 on v5e).
    B, C, D, H, W, N = 2, 8, 8, 8, 8, 16
    fg = jax.random.normal(k1, (B, C, D, H, W), dtype=jnp.float32)
    qp = jax.random.uniform(k2, (B, N, 3), dtype=jnp.float32, minval=-1.0, maxval=1.0)
    out = grid_decoder(qp, fg, normalize=True)
    jax.block_until_ready(out)
    ref = _grid_decoder_ref(qp, fg, normalize=True)
    assert out.shape == (B, N, C)
    assert jnp.allclose(out, ref, atol=4e-2, rtol=4e-2), (
        f"normalize=True mismatch, max err {jnp.max(jnp.abs(out - ref))}")

    # Test 2: non-power-of-two grid, ragged spatial tiles, split spatial reduction
    # (B * nt == 1 -> n_split == 2), queries partly outside [-1, 1] (border clamp),
    # normalize off, explicit f32 weight path (v5e-style).
    B2, C2, D2, H2, W2, N2 = 1, 4, 5, 6, 7, 200
    fg2 = jax.random.normal(k3, (B2, C2, D2, H2, W2), dtype=jnp.float32)
    qp2 = jax.random.uniform(k4, (B2, N2, 3), dtype=jnp.float32, minval=-1.2, maxval=1.2)
    out2 = grid_decoder(qp2, fg2, normalize=False, ts=128, weight_dtype=jnp.float32)
    jax.block_until_ready(out2)
    ref2 = _grid_decoder_ref(qp2, fg2, normalize=False)
    assert out2.shape == (B2, N2, C2)
    assert jnp.allclose(out2, ref2, atol=3e-2, rtol=3e-2), (
        f"normalize=False mismatch, max err {jnp.max(jnp.abs(out2 - ref2))}")

    print("KERNEL_OK")
</pallas_src>

<mosaic_0001>
module attributes {stable_mosaic.version = 11 : i64} {
  func.func @_grid_decoder_kernel(%arg0: i32, %arg1: i32, %arg2: i32, %arg3: i32, %arg4: memref<1x3x128xf32, #tpu.memory_space<vmem>>, %arg5: memref<1x8x512xf32, #tpu.memory_space<vmem>>, %arg6: memref<512x3xf32, #tpu.memory_space<vmem>>, %arg7: memref<1x1x8x128xf32, #tpu.memory_space<vmem>>) attributes {dimension_semantics = [#tpu.dimension_semantics<parallel>, #tpu.dimension_semantics<parallel>, #tpu.dimension_semantics<parallel>, #tpu.dimension_semantics<arbitrary>], iteration_bounds = array<i64: 1, 2, 1, 1>, scalar_prefetch = 0 : i64, scratch_operands = 0 : i64, tpu.core_type = #tpu.core_type<tc>, window_params = [{transform_indices = @transform_0, window_bounds = array<i64: 1, 3, 128>}, {transform_indices = @transform_1, window_bounds = array<i64: 1, 8, 512>}, {transform_indices = @transform_2, window_bounds = array<i64: 512, 3>}, {transform_indices = @transform_3, window_bounds = array<i64: 1, 1, 8, 128>}]} {
    %c0_i32 = arith.constant 0 : i32
    %0 = arith.cmpi eq, %arg3, %c0_i32 : i32
    %1 = arith.extui %0 : i1 to i32
    %c0_i32_0 = arith.constant 0 : i32
    %2 = arith.cmpi ne, %1, %c0_i32_0 : i32
    scf.if %2 {
      %cst_36 = arith.constant 0.000000e+00 : f32
      %72 = vector.broadcast %cst_36 : f32 to vector<8x128xf32>
      %c0_37 = arith.constant 0 : index
      %c0_38 = arith.constant 0 : index
      %c0_39 = arith.constant 0 : index
      %c0_40 = arith.constant 0 : index
      %73 = vector.load %arg7[%c0_37, %c0_38, %c0_39, %c0_40] : memref<1x1x8x128xf32, #tpu.memory_space<vmem>>, vector<1x1x8x128xf32>
      %74 = vector.shape_cast %73 : vector<1x1x8x128xf32> to vector<8x128xf32>
      %75 = vector.shape_cast %72 : vector<8x128xf32> to vector<1x1x8x128xf32>
      tpu.vector_store %arg7[%c0_37, %c0_38, %c0_39, %c0_40], %75 {strides = array<i32>} : memref<1x1x8x128xf32, #tpu.memory_space<vmem>>, vector<1x1x8x128xf32>,
    } else {
    }
    %c0 = arith.constant 0 : index
    %c0_1 = arith.constant 0 : index
    %c0_2 = arith.constant 0 : index
    %3 = vector.load %arg4[%c0, %c0_1, %c0_2] : memref<1x3x128xf32, #tpu.memory_space<vmem>>, vector<1x3x128xf32>
    %4 = vector.shape_cast %3 : vector<1x3x128xf32> to vector<3x128xf32>
    %5 = vector.extract_strided_slice %4 {offsets = [0, 0], sizes = [1, 128], strides = [1, 1]} : vector<3x128xf32> to vector<1x128xf32>
    %cst = arith.constant 1.000000e+00 : f32
    %6 = vector.broadcast %cst : f32 to vector<1x128xf32>
    %7 = arith.addf %5, %6 : vector<1x128xf32>
    %cst_3 = arith.constant 3.500000e+00 : f32
    %8 = vector.broadcast %cst_3 : f32 to vector<1x128xf32>
    %9 = arith.mulf %7, %8 : vector<1x128xf32>
    %cst_4 = arith.constant 0.000000e+00 : f32
    %cst_5 = arith.constant 7.000000e+00 : f32
    %10 = vector.broadcast %cst_4 : f32 to vector<1x128xf32>
    %11 = arith.maximumf %10, %9 : vector<1x128xf32>
    %12 = vector.broadcast %cst_5 : f32 to vector<1x128xf32>
    %13 = arith.minimumf %12, %11 : vector<1x128xf32>
    %c0_6 = arith.constant 0 : index
    %c0_7 = arith.constant 0 : index
    %14 = vector.load %arg6[%c0_6, %c0_7] : memref<512x3xf32, #tpu.memory_space<vmem>>, vector<512x1xf32>
    %15 = vector.broadcast %14 : vector<512x1xf32> to vector<512x128xf32>
    %16 = vector.broadcast %13 : vector<1x128xf32> to vector<512x128xf32>
    %17 = arith.subf %15, %16 : vector<512x128xf32>
    %18 = math.absf %17 : vector<512x128xf32>
    %cst_8 = arith.constant 1.000000e+00 : f32
    %19 = vector.broadcast %cst_8 : f32 to vector<512x128xf32>
    %20 = arith.subf %19, %18 : vector<512x128xf32>
    %cst_9 = arith.constant 0.000000e+00 : f32
    %21 = vector.broadcast %cst_9 : f32 to vector<512x128xf32>
    %22 = arith.maximumf %20, %21 : vector<512x128xf32>
    %23 = vector.extract_strided_slice %4 {offsets = [1, 0], sizes = [1, 128], strides = [1, 1]} : vector<3x128xf32> to vector<1x128xf32>
    %cst_10 = arith.constant 1.000000e+00 : f32
    %24 = vector.broadcast %cst_10 : f32 to vector<1x128xf32>
    %25 = arith.addf %23, %24 : vector<1x128xf32>
    %cst_11 = arith.constant 3.500000e+00 : f32
    %26 = vector.broadcast %cst_11 : f32 to vector<1x128xf32>
    %27 = arith.mulf %25, %26 : vector<1x128xf32>
    %cst_12 = arith.constant 0.000000e+00 : f32
    %cst_13 = arith.constant 7.000000e+00 : f32
    %28 = vector.broadcast %cst_12 : f32 to vector<1x128xf32>
    %29 = arith.maximumf %28, %27 : vector<1x128xf32>
    %30 = vector.broadcast %cst_13 : f32 to vector<1x128xf32>
    %31 = arith.minimumf %30, %29 : vector<1x128xf32>
    %c0_14 = arith.constant 0 : index
    %c1 = arith.constant 1 : index
    %32 = vector.load %arg6[%c0_14, %c1] : memref<512x3xf32, #tpu.memory_space<vmem>>, vector<512x1xf32>
    %33 = vector.broadcast %32 : vector<512x1xf32> to vector<512x128xf32>
    %34 = vector.broadcast %31 : vector<1x128xf32> to vector<512x128xf32>
    %35 = arith.subf %33, %34 : vector<512x128xf32>
    %36 = math.absf %35 : vector<512x128xf32>
    %cst_15 = arith.constant 1.000000e+00 : f32
    %37 = vector.broadcast %cst_15 : f32 to vector<512x128xf32>
    %38 = arith.subf %37, %36 : vector<512x128xf32>
    %cst_16 = arith.constant 0.000000e+00 : f32
    %39 = vector.broadcast %cst_16 : f32 to vector<512x128xf32>
    %40 = arith.maximumf %38, %39 : vector<512x128xf32>
    %41 = vector.extract_strided_slice %4 {offsets = [2, 0], sizes = [1, 128], strides = [1, 1]} : vector<3x128xf32> to vector<1x128xf32>
    %cst_17 = arith.constant 1.000000e+00 : f32
    %42 = vector.broadcast %cst_17 : f32 to vector<1x128xf32>
    %43 = arith.addf %41, %42 : vector<1x128xf32>
    %cst_18 = arith.constant 3.500000e+00 : f32
    %44 = vector.broadcast %cst_18 : f32 to vector<1x128xf32>
    %45 = arith.mulf %43, %44 : vector<1x128xf32>
    %cst_19 = arith.constant 0.000000e+00 : f32
    %cst_20 = arith.constant 7.000000e+00 : f32
    %46 = vector.broadcast %cst_19 : f32 to vector<1x128xf32>
    %47 = arith.maximumf %46, %45 : vector<1x128xf32>
    %48 = vector.broadcast %cst_20 : f32 to vector<1x128xf32>
    %49 = arith.minimumf %48, %47 : vector<1x128xf32>
    %c0_21 = arith.constant 0 : index
    %c2 = arith.constant 2 : index
    %50 = vector.load %arg6[%c0_21, %c2] : memref<512x3xf32, #tpu.memory_space<vmem>>, vector<512x1xf32>
    %51 = vector.broadcast %50 : vector<512x1xf32> to vector<512x128xf32>
    %52 = vector.broadcast %49 : vector<1x128xf32> to vector<512x128xf32>
    %53 = arith.subf %51, %52 : vector<512x128xf32>
    %54 = math.absf %53 : vector<512x128xf32>
    %cst_22 = arith.constant 1.000000e+00 : f32
    %55 = vector.broadcast %cst_22 : f32 to vector<512x128xf32>
    %56 = arith.subf %55, %54 : vector<512x128xf32>
    %cst_23 = arith.constant 0.000000e+00 : f32
    %57 = vector.broadcast %cst_23 : f32 to vector<512x128xf32>
    %58 = arith.maximumf %56, %57 : vector<512x128xf32>
    %59 = arith.mulf %22, %40 : vector<512x128xf32>
    %60 = arith.mulf %59, %58 : vector<512x128xf32>
    %61 = arith.truncf %60 : vector<512x128xf32> to vector<512x128xbf16>
    %c0_24 = arith.constant 0 : index
    %c0_25 = arith.constant 0 : index
    %c0_26 = arith.constant 0 : index
    %62 = vector.load %arg5[%c0_24, %c0_25, %c0_26] : memref<1x8x512xf32, #tpu.memory_space<vmem>>, vector<1x8x512xf32>
    %63 = vector.shape_cast %62 : vector<1x8x512xf32> to vector<8x512xf32>
    %64 = arith.truncf %63 : vector<8x512xf32> to vector<8x512xbf16>
    %cst_27 = arith.constant dense<0.000000e+00> : vector<8x128xf32>
    %65 = tpu.matmul %64, %61, %cst_27 {dimension_numbers = #tpu.dot_dimension_numbers<[1], [0], [0], [1], [0, 0, 1, 1], [], []>} : vector<8x512xbf16>, vector<512x128xbf16>, vector<8x128xf32> -> vector<8x128xf32>
    %c0_28 = arith.constant 0 : index
    %c0_29 = arith.constant 0 : index
    %c0_30 = arith.constant 0 : index
    %c0_31 = arith.constant 0 : index
    %66 = vector.load %arg7[%c0_28, %c0_29, %c0_30, %c0_31] : memref<1x1x8x128xf32, #tpu.memory_space<vmem>>, vector<1x1x8x128xf32>
    %67 = vector.shape_cast %66 : vector<1x1x8x128xf32> to vector<8x128xf32>
    %68 = arith.addf %67, %65 : vector<8x128xf32>
    %c0_32 = arith.constant 0 : index
    %c0_33 = arith.constant 0 : index
    %c0_34 = arith.constant 0 : index
    %c0_35 = arith.constant 0 : index
    %69 = vector.load %arg7[%c0_32, %c0_33, %c0_34, %c0_35] : memref<1x1x8x128xf32, #tpu.memory_space<vmem>>, vector<1x1x8x128xf32>
    %70 = vector.shape_cast %69 : vector<1x1x8x128xf32> to vector<8x128xf32>
    %71 = vector.shape_cast %68 : vector<8x128xf32> to vector<1x1x8x128xf32>
    tpu.vector_store %arg7[%c0_32, %c0_33, %c0_34, %c0_35], %71 {strides = array<i32>} : memref<1x1x8x128xf32, #tpu.memory_space<vmem>>, vector<1x1x8x128xf32>,
    return
  }
  func.func @transform_0(%arg0: i32, %arg1: i32, %arg2: i32, %arg3: i32) -> (i32, i32, i32) {
    %c0_i32 = arith.constant 0 : i32
    %c0_i32_0 = arith.constant 0 : i32
    return %arg1, %c0_i32, %arg2 : i32, i32, i32
  }
  func.func @transform_1(%arg0: i32, %arg1: i32, %arg2: i32, %arg3: i32) -> (i32, i32, i32) {
    %c1_i32 = arith.constant 1 : i32
    %0 = arith.muli %arg0, %c1_i32 : i32
    %1 = arith.addi %0, %arg3 : i32
    %c0_i32 = arith.constant 0 : i32
    %c0_i32_0 = arith.constant 0 : i32
    return %arg1, %c0_i32, %1 : i32, i32, i32
  }
  func.func @transform_2(%arg0: i32, %arg1: i32, %arg2: i32, %arg3: i32) -> (i32, i32) {
    %c1_i32 = arith.constant 1 : i32
    %0 = arith.muli %arg0, %c1_i32 : i32
    %1 = arith.addi %0, %arg3 : i32
    %c0_i32 = arith.constant 0 : i32
    %c0_i32_0 = arith.constant 0 : i32
    return %1, %c0_i32 : i32, i32
  }
  func.func @transform_3(%arg0: i32, %arg1: i32, %arg2: i32, %arg3: i32) -> (i32, i32, i32, i32) {
    %c0_i32 = arith.constant 0 : i32
    %c0_i32_0 = arith.constant 0 : i32
    return %arg0, %arg1, %c0_i32, %arg2 : i32, i32, i32, i32
  }
}

</mosaic_0001>

<llo_original>
// kernel: tpu_custom_call.1
$region0: #{tpu_custom_call.1}
  #allocation0 [shape = 'u32[]', space=smem, size = 0x4, offset = 0x4, fixed_abs, tag = 'smem constant byte address 0x4 - core index']
  #allocation1 [shape = 'u32[144,128]{1,0:T(1,128)}', space=vmem, size = 0x12000, scoped, tag = 'internal scratch']
  %s0 = inlined_call_operand.vmem [shape: f32[2,3,128], index: 0, kind: input, shape index: {}]
  %s1 = inlined_call_operand.vmem [shape: f32[2,8,512], index: 1, kind: input, shape index: {}]
  %s2 = inlined_call_operand.vmem [shape: f32[512,3], index: 2, kind: input, shape index: {}]
  %s3 = inlined_call_operand.hbm [shape: f32[1,2,8,128], index: 3, kind: output, shape index: {}]
  %s4 = sld [smem:[#allocation0]]
  $region49: #{tpu_custom_call.1} parent=0
    _
  %s6 = ssub.s32 1, %s4
  %s7 = scalar_select 0, %s6, %s4
  $region1: #{tpu_custom_call.1} parent=0
    #allocation2 [shape = 'u8[8192]{0}', space=vmem, size = 0x2000, scoped, tag = 'output window, operand 0']
    #allocation3 [shape = 's32[2]{0}', space=sflag, size = 0x8, scoped, tag = 'scoped memory for tpu_custom_call.1']
    %8 = vsyncpa [#allocation3], 0
    %s9 = scalar_lea.sflag [#allocation3], 1
    %10 = vsyncpa %s9, 0
    loop: start=0, step=1, limit=4
    $region2: #{tpu_custom_call.1} parent=1 // loop_pre_header
      _
    $region3: #{tpu_custom_call.1} parent=1 // loop_header
      %s12 = sphi 0, %s16
      %p13 = scmp.ge.s32.totalorder %s12, 4
      %s19 = sphi 0, %s45
      %s20 = sphi 0, %s41
      %s21 = sphi 0, %s37
      %s22 = sphi 0, %s33
      %s23 = sphi 0, %s19
      %s24 = sphi 0, %s20
      %s25 = sphi 0, %s21
      %s26 = sphi 0, %s22
      %s27 = sphi 0, %s23
      %s28 = sphi 0, %s24
      %s29 = sphi 0, %s25
      %s30 = sphi 0, %s26
      %s50 = sphi 0, %s52
      %s53 = sphi 0, %s50
      %s54 = sphi 0, %s53
      %s70 = sphi 0, %s54
      %s80 = sphi 0, %s82
      %s83 = sphi 0, %s80
      %s84 = sphi 0, %s83
      %s100 = sphi 0, %s84
      %s108 = sphi 0, %s110
      %s111 = sphi 0, %s108
      %s112 = sphi 0, %s111
      %s128 = sphi 0, %s112
      %s138 = sphi 0, %s140
      %s141 = sphi 0, %s138
      %s142 = sphi 0, %s141
      %s158 = sphi 0, %s142
    $region4: #{tpu_custom_call.1} parent=1 // loop_header_branch
      %15 = sbr.rel (%p13) target = $region8
    $region5: #{tpu_custom_call.1} parent=1 // loop_body
      %s17 = ssub.s32 %s12, 1
      %s18 = ssub.s32 %s12, 2
      %s31 = sadd.s32 1, %s22
      %p32 = scmp.ge.s32.totalorder %s31, 1
      %s33 = scalar_select %p32, 0, %s31
      %s34 = sadd.s32 1, %s21
      %s35 = scalar_select %p32, %s34, %s21
      %p36 = scmp.ge.s32.totalorder %s35, 1
      %s37 = scalar_select %p36, 0, %s35
      %s38 = sadd.s32 1, %s20
      %s39 = scalar_select %p36, %s38, %s20
      %p40 = scmp.ge.s32.totalorder %s39, 2
      %s41 = scalar_select %p40, 0, %s39
      %s42 = sadd.s32 1, %s19
      %s43 = scalar_select %p40, %s42, %s19
      %p44 = scmp.ge.s32.totalorder %s43, 1
      %s45 = scalar_select %p44, 0, %s43
      %s46 = ssub.s32 %s20, %s41
      %s47 = ssub.s32 %s21, %s37
      %s48 = sor.u32 %s46, %s47
      %p49 = scmp.eq.s32.totalorder %s48, 0
      %s51 = sadd.s32 %s50, 1
      %s52 = scalar_select %p49, %s50, %s51
      %p55 = pneg %p49
      %p56 = scmp.eq.s32.totalorder %s12, 1
      %p57 = por %p55, %p56
      %p58 = scmp.ne.s32.totalorder %s50, %s53
      %p59 = scmp.eq.s32.totalorder %s12, 0
      %p60 = por %p58, %p59
      %p61 = scmp.ne.s32.totalorder %s50, %s53
      %p62 = scmp.eq.s32.totalorder %s17, 1
      %p63 = por %p61, %p62
      %p64 = scmp.ne.s32.totalorder %s53, %s54
      %p65 = scmp.eq.s32.totalorder %s17, 0
      %p66 = por %p64, %p65
      %p67 = scmp.ne.s32.totalorder %s53, %s54
      %p68 = scmp.eq.s32.totalorder %s18, 1
      %p69 = por %p67, %p68
      %p71 = scmp.ne.s32.totalorder %s54, %s70
      %p72 = scmp.eq.s32.totalorder %s18, 0
      %p73 = por %p71, %p72
      %s74 = sadd.s32 %s19, %s22
      %s75 = sadd.s32 %s45, %s33
      %s76 = ssub.s32 %s20, %s41
      %s77 = ssub.s32 %s74, %s75
      %s78 = sor.u32 %s76, %s77
      %p79 = scmp.eq.s32.totalorder %s78, 0
      %s81 = sadd.s32 %s80, 1
      %s82 = scalar_select %p79, %s80, %s81
      %p85 = pneg %p79
      %p86 = scmp.eq.s32.totalorder %s12, 1
      %p87 = por %p85, %p86
      %p88 = scmp.ne.s32.totalorder %s80, %s83
      %p89 = scmp.eq.s32.totalorder %s12, 0
      %p90 = por %p88, %p89
      %p91 = scmp.ne.s32.totalorder %s80, %s83
      %p92 = scmp.eq.s32.totalorder %s17, 1
      %p93 = por %p91, %p92
      %p94 = scmp.ne.s32.totalorder %s83, %s84
      %p95 = scmp.eq.s32.totalorder %s17, 0
      %p96 = por %p94, %p95
      %p97 = scmp.ne.s32.totalorder %s83, %s84
      %p98 = scmp.eq.s32.totalorder %s18, 1
      %p99 = por %p97, %p98
      %p101 = scmp.ne.s32.totalorder %s84, %s100
      %p102 = scmp.eq.s32.totalorder %s18, 0
      %p103 = por %p101, %p102
      %s104 = sadd.s32 %s19, %s22
      %s105 = sadd.s32 %s45, %s33
      %s106 = ssub.s32 %s104, %s105
      %p107 = scmp.eq.s32.totalorder %s106, 0
      %s109 = sadd.s32 %s108, 1
      %s110 = scalar_select %p107, %s108, %s109
      %p113 = pneg %p107
      %p114 = scmp.eq.s32.totalorder %s12, 1
      %p115 = por %p113, %p114
      %p116 = scmp.ne.s32.totalorder %s108, %s111
      %p117 = scmp.eq.s32.totalorder %s12, 0
      %p118 = por %p116, %p117
      %p119 = scmp.ne.s32.totalorder %s108, %s111
      %p120 = scmp.eq.s32.totalorder %s17, 1
      %p121 = por %p119, %p120
      %p122 = scmp.ne.s32.totalorder %s111, %s112
      %p123 = scmp.eq.s32.totalorder %s17, 0
      %p124 = por %p122, %p123
      %p125 = scmp.ne.s32.totalorder %s111, %s112
      %p126 = scmp.eq.s32.totalorder %s18, 1
      %p127 = por %p125, %p126
      %p129 = scmp.ne.s32.totalorder %s112, %s128
      %p130 = scmp.eq.s32.totalorder %s18, 0
      %p131 = por %p129, %p130
      %s132 = ssub.s32 %s19, %s45
      %s133 = ssub.s32 %s20, %s41
      %s134 = sor.u32 %s132, %s133
      %s135 = ssub.s32 %s21, %s37
      %s136 = sor.u32 %s134, %s135
      %p137 = scmp.eq.s32.totalorder %s136, 0
      %s139 = sadd.s32 %s138, 1
      %s140 = scalar_select %p137, %s138, %s139
      %p143 = pneg %p137
      %p144 = scmp.eq.s32.totalorder %s12, 1
      %p145 = por %p143, %p144
      %p146 = scmp.ne.s32.totalorder %s138, %s141
      %p147 = scmp.eq.s32.totalorder %s12, 0
      %p148 = por %p146, %p147
      %p149 = scmp.ne.s32.totalorder %s138, %s141
      %p150 = scmp.eq.s32.totalorder %s17, 1
      %p151 = por %p149, %p150
      %p152 = scmp.ne.s32.totalorder %s141, %s142
      %p153 = scmp.eq.s32.totalorder %s17, 0
      %p154 = por %p152, %p153
      %p155 = scmp.ne.s32.totalorder %s141, %s142
      %p156 = scmp.eq.s32.totalorder %s18, 1
      %p157 = por %p155, %p156
      %p159 = scmp.ne.s32.totalorder %s142, %s158
      %p160 = scmp.eq.s32.totalorder %s18, 0
      %p161 = por %p159, %p160
      %p162 = scmp.le.s32.totalorder 1, %s12
      %p163 = scmp.lt.s32.totalorder %s12, 3
      %p164 = pnand %p162, %p163
      %p165 = pneg %p164
      // Predicated region
      $region9: #{tpu_custom_call.1} parent=5 // pred_check
        _
      $region10: #{tpu_custom_call.1} parent=5 // pred_check_branch
        %167 = sbr.rel (%p164) target = $region12
      $region11: #{tpu_custom_call.1} parent=5 // pred_region
        %s168 = ssub.s32 %s12, 1
        // Predicated region
        $region13: #{tpu_custom_call.1} parent=11 // pred_check
          %p169 = pneg %p124
        $region14: #{tpu_custom_call.1} parent=11 // pred_check_branch
          %171 = sbr.rel (%p169) target = $region16
        $region15: #{tpu_custom_call.1} parent=11 // pred_region
          %s172 = sadd.s32 %s23, %s26
          %s173 = smul.u32 64, %s172
          %p174 = scmp.lt.s32.totalorder %s173, 63
          %s175 = scalar_select %p174, %s173, 63
          %s176 = smul.addr %s175, 8
          %s177 = scalar_lea.vmem %s2, %s176
          %s178 = sadd.s32 %s23, %s26
          %s179 = smul.u32 64, %s178
        $region16: #{tpu_custom_call.1} parent=11 // pred_fallthru
          _
      $region12: #{tpu_custom_call.1} parent=5 // pred_fallthru
        _
      %p180 = scmp.lt.s32.totalorder %s12, 2
      // Predicated region
      $region17: #{tpu_custom_call.1} parent=5 // pred_check
        %p181 = pneg %p180
      $region18: #{tpu_custom_call.1} parent=5 // pred_check_branch
        %183 = sbr.rel (%p181) target = $region20
      $region19: #{tpu_custom_call.1} parent=5 // pred_region
        // Predicated region
        $region21: #{tpu_custom_call.1} parent=19 // pred_check
          %p184 = pneg %p60
        $region22: #{tpu_custom_call.1} parent=19 // pred_check_branch
          %186 = sbr.rel (%p184) target = $region24
        $region23: #{tpu_custom_call.1} parent=19 // pred_region
          %p187 = scmp.lt.s32.totalorder %s20, 1
          %s188 = scalar_select %p187, %s20, 1
          %p189 = scmp.lt.s32.totalorder %s21, 0
          %s190 = scalar_select %p189, %s21, 0
          %s191 = sadd.s32 %s190, %s188
          %s192 = smul.addr %s191, 4
          %s193 = scalar_lea.vmem %s0, %s192
        $region24: #{tpu_custom_call.1} parent=19 // pred_fallthru
          _
        // Predicated region
        $region25: #{tpu_custom_call.1} parent=19 // pred_check
          %p194 = pneg %p90
        $region26: #{tpu_custom_call.1} parent=19 // pred_check_branch
          %196 = sbr.rel (%p194) target = $region28
        $region27: #{tpu_custom_call.1} parent=19 // pred_region
          %s197 = sadd.s32 %s19, %s22
          %s198 = smul.u32 4, %s197
          %p199 = scmp.lt.s32.totalorder %s20, 1
          %s200 = scalar_select %p199, %s20, 1
          %p201 = scmp.lt.s32.totalorder %s198, 3
          %s202 = scalar_select %p201, %s198, 3
          %s203 = smul.addr %s200, 4
          %s204 = sadd.s32 %s202, %s203
          %s205 = smul.addr %s204, 8
          %s206 = scalar_lea.vmem %s1, %s205
          %s207 = sadd.s32 %s19, %s22
          %s208 = smul.u32 4, %s207
        $region28: #{tpu_custom_call.1} parent=19 // pred_fallthru
          _
      $region20: #{tpu_custom_call.1} parent=5 // pred_fallthru
        _
      %p209 = scmp.le.s32.totalorder 1, %s12
      %p210 = scmp.lt.s32.totalorder %s12, 3
      %p211 = pnand %p209, %p210
      %p212 = pneg %p211
      // Predicated region
      $region29: #{tpu_custom_call.1} parent=5 // pred_check
        _
      $region30: #{tpu_custom_call.1} parent=5 // pred_check_branch
        %214 = sbr.rel (%p211) target = $region32
      $region31: #{tpu_custom_call.1} parent=5 // pred_region
        %s215 = ssub.s32 %s12, 1
        %p216 = scmp.lt.s32.totalorder %s24, 1
        %s217 = scalar_select %p216, %s24, 1
        %p218 = scmp.lt.s32.totalorder %s25, 0
        %s219 = scalar_select %p218, %s25, 0
        %s220 = sadd.s32 %s219, %s217
        %s221 = smul.addr %s220, 4
        %s222 = scalar_lea.vmem %s0, %s221
        %p223 = pneg %p66
        %p224 = pneg %p63
        %s225 = sadd.s32 %s23, %s26
        %s226 = smul.u32 4, %s225
        %p227 = scmp.lt.s32.totalorder %s24, 1
        %s228 = scalar_select %p227, %s24, 1
        %p229 = scmp.lt.s32.totalorder %s226, 3
        %s230 = scalar_select %p229, %s226, 3
        %s231 = smul.addr %s228, 4
        %s232 = sadd.s32 %s230, %s231
        %s233 = smul.addr %s232, 8
        %s234 = scalar_lea.vmem %s1, %s233
        %p235 = pneg %p96
        %p236 = pneg %p93
        %s237 = sadd.s32 %s23, %s26
        %s238 = smul.u32 64, %s237
        %p239 = scmp.lt.s32.totalorder %s238, 63
        %s240 = scalar_select %p239, %s238, 63
        %s241 = smul.addr %s240, 8
        %s242 = scalar_lea.vmem %s2, %s241
        %p243 = pneg %p124
        %p244 = pneg %p121
        %p245 = pneg %p154
        %p246 = pneg %p151
        %s247 = sand.u32 %s141, 1
        %s248 = scalar_lea.sflag [#allocation3], %s247
        %s249 = sand.u32 %s141, 1
        %s250 = smul.addr %s249, 8
        %s251 = scalar_lea.vmem [#allocation2], %s250
        %p252 = scmp.lt.s32.totalorder %s24, 1
        %s253 = scalar_select %p252, %s24, 1
        %p254 = scmp.lt.s32.totalorder %s25, 0
        %s255 = scalar_select %p254, %s25, 0
        %s256 = sadd.s32 %s255, %s253
        %s257 = smul.addr %s256, 4
        %s258 = scalar_lea.vmem %s0, %s257
        %s259 = sadd.s32 %s23, %s26
        %s260 = smul.u32 4, %s259
        %p261 = scmp.lt.s32.totalorder %s24, 1
        %s262 = scalar_select %p261, %s24, 1
        %p263 = scmp.lt.s32.totalorder %s260, 3
        %s264 = scalar_select %p263, %s260, 3
        %s265 = smul.addr %s262, 4
        %s266 = sadd.s32 %s264, %s265
        %s267 = smul.addr %s266, 8
        %s268 = scalar_lea.vmem %s1, %s267
        %s269 = sadd.s32 %s23, %s26
        %s270 = smul.u32 4, %s269
        %s271 = sadd.s32 %s23, %s26
        %s272 = smul.u32 64, %s271
        %p273 = scmp.lt.s32.totalorder %s272, 63
        %s274 = scalar_select %p273, %s272, 63
        %s275 = smul.addr %s274, 8
        %s276 = scalar_lea.vmem %s2, %s275
        %s277 = sadd.s32 %s23, %s26
        %s278 = smul.u32 64, %s277
        %p280 = scmp.eq.s32.totalorder %s26, 0
        // Predicated region
        $region33: #{tpu_custom_call.1} parent=31 // pred_check
          %p281 = pneg %p280
        $region34: #{tpu_custom_call.1} parent=31 // pred_check_branch
          %283 = sbr.rel (%p281) target = $region36
        $region35: #{tpu_custom_call.1} parent=31 // pred_region
          %284 = vst [vmem:[%s251] sm:$0xff] 0.0
        $region36: #{tpu_custom_call.1} parent=31 // pred_fallthru
          _
        %v285 = vld [vmem:[%s258] sm:$0x7]
        %v286 = vadd.f32 %v285, 1.0
        %v287 = vmul.f32 %v286, 3.5
        %v288 = vmax.f32 %v287, 0.0
        %v289 = vmin.f32 %v288, 7.0
        %v290 = vld [vmem:[%s276] sm:$0xff]
        %v291 = vld [vmem:[%s276 + $0x8] sm:$0xff]
        %v292 = vld [vmem:[%s276 + $0x10] sm:$0xff]
        %v293 = vld [vmem:[%s276 + $0x18] sm:$0xff]
        %v294 = vld [vmem:[%s276 + $0x20] sm:$0xff]
        %v295 = vld [vmem:[%s276 + $0x28] sm:$0xff]
        %v296 = vld [vmem:[%s276 + $0x30] sm:$0xff]
        %v297 = vld [vmem:[%s276 + $0x38] sm:$0xff]
        %v298 = vld [vmem:[%s276 + $0x40] sm:$0xff]
        %v299 = vld [vmem:[%s276 + $0x48] sm:$0xff]
        %v300 = vld [vmem:[%s276 + $0x50] sm:$0xff]
        %v301 = vld [vmem:[%s276 + $0x58] sm:$0xff]
        %v302 = vld [vmem:[%s276 + $0x60] sm:$0xff]
        %v303 = vld [vmem:[%s276 + $0x68] sm:$0xff]
        %v304 = vld [vmem:[%s276 + $0x70] sm:$0xff]
        %v305 = vld [vmem:[%s276 + $0x78] sm:$0xff]
        %v306 = vld [vmem:[%s276 + $0x80] sm:$0xff]
        %v307 = vld [vmem:[%s276 + $0x88] sm:$0xff]
        %v308 = vld [vmem:[%s276 + $0x90] sm:$0xff]
        %v309 = vld [vmem:[%s276 + $0x98] sm:$0xff]
        %v310 = vld [vmem:[%s276 + $0xa0] sm:$0xff]
        %v311 = vld [vmem:[%s276 + $0xa8] sm:$0xff]
        %v312 = vld [vmem:[%s276 + $0xb0] sm:$0xff]
        %v313 = vld [vmem:[%s276 + $0xb8] sm:$0xff]
        %v314 = vld [vmem:[%s276 + $0xc0] sm:$0xff]
        %v315 = vld [vmem:[%s276 + $0xc8] sm:$0xff]
        %v316 = vld [vmem:[%s276 + $0xd0] sm:$0xff]
        %v317 = vld [vmem:[%s276 + $0xd8] sm:$0xff]
        %v318 = vld [vmem:[%s276 + $0xe0] sm:$0xff]
        %v319 = vld [vmem:[%s276 + $0xe8] sm:$0xff]
        %v320 = vld [vmem:[%s276 + $0xf0] sm:$0xff]
        %v321 = vld [vmem:[%s276 + $0xf8] sm:$0xff]
        %v322 = vld [vmem:[%s276 + $0x100] sm:$0xff]
        %v323 = vld [vmem:[%s276 + $0x108] sm:$0xff]
        %v324 = vld [vmem:[%s276 + $0x110] sm:$0xff]
        %v325 = vld [vmem:[%s276 + $0x118] sm:$0xff]
        %v326 = vld [vmem:[%s276 + $0x120] sm:$0xff]
        %v327 = vld [vmem:[%s276 + $0x128] sm:$0xff]
        %v328 = vld [vmem:[%s276 + $0x130] sm:$0xff]
        %v329 = vld [vmem:[%s276 + $0x138] sm:$0xff]
        %v330 = vld [vmem:[%s276 + $0x140] sm:$0xff]
        %v331 = vld [vmem:[%s276 + $0x148] sm:$0xff]
        %v332 = vld [vmem:[%s276 + $0x150] sm:$0xff]
        %v333 = vld [vmem:[%s276 + $0x158] sm:$0xff]
        %v334 = vld [vmem:[%s276 + $0x160] sm:$0xff]
        %v335 = vld [vmem:[%s276 + $0x168] sm:$0xff]
        %v336 = vld [vmem:[%s276 + $0x170] sm:$0xff]
        %v337 = vld [vmem:[%s276 + $0x178] sm:$0xff]
        %v338 = vld [vmem:[%s276 + $0x180] sm:$0xff]
        %v339 = vld [vmem:[%s276 + $0x188] sm:$0xff]
        %v340 = vld [vmem:[%s276 + $0x190] sm:$0xff]
        %v341 = vld [vmem:[%s276 + $0x198] sm:$0xff]
        %v342 = vld [vmem:[%s276 + $0x1a0] sm:$0xff]
        %v343 = vld [vmem:[%s276 + $0x1a8] sm:$0xff]
        %v344 = vld [vmem:[%s276 + $0x1b0] sm:$0xff]
        %v345 = vld [vmem:[%s276 + $0x1b8] sm:$0xff]
        %v346 = vld [vmem:[%s276 + $0x1c0] sm:$0xff]
        %v347 = vld [vmem:[%s276 + $0x1c8] sm:$0xff]
        %v348 = vld [vmem:[%s276 + $0x1d0] sm:$0xff]
        %v349 = vld [vmem:[%s276 + $0x1d8] sm:$0xff]
        %v350 = vld [vmem:[%s276 + $0x1e0] sm:$0xff]
        %v351 = vld [vmem:[%s276 + $0x1e8] sm:$0xff]
        %v352 = vld [vmem:[%s276 + $0x1f0] sm:$0xff]
        %v353 = vld [vmem:[%s276 + $0x1f8] sm:$0xff]
        %355 = vset.pattern.permute.xlu0 0
        %356 = vperm.xlu0 %355, %v290
        %v357 = vpop.permute.xlu0 %356
        %360 = vset.pattern.permute.xlu0 0
        %361 = vperm.xlu0 %360, %v291
        %v362 = vpop.permute.xlu0 %361
        %365 = vset.pattern.permute.xlu0 0
        %366 = vperm.xlu0 %365, %v292
        %v367 = vpop.permute.xlu0 %366
        %370 = vset.pattern.permute.xlu0 0
        %371 = vperm.xlu0 %370, %v293
        %v372 = vpop.permute.xlu0 %371
        %375 = vset.pattern.permute.xlu0 0
        %376 = vperm.xlu0 %375, %v294
        %v377 = vpop.permute.xlu0 %376
        %380 = vset.pattern.permute.xlu0 0
        %381 = vperm.xlu0 %380, %v295
        %v382 = vpop.permute.xlu0 %381
        %385 = vset.pattern.permute.xlu0 0
        %386 = vperm.xlu0 %385, %v296
        %v387 = vpop.permute.xlu0 %386
        %390 = vset.pattern.permute.xlu0 0
        %391 = vperm.xlu0 %390, %v297
        %v392 = vpop.permute.xlu0 %391
        %395 = vset.pattern.permute.xlu0 0
        %396 = vperm.xlu0 %395, %v298
        %v397 = vpop.permute.xlu0 %396
        %400 = vset.pattern.permute.xlu0 0
        %401 = vperm.xlu0 %400, %v299
        %v402 = vpop.permute.xlu0 %401
        %405 = vset.pattern.permute.xlu0 0
        %406 = vperm.xlu0 %405, %v300
        %v407 = vpop.permute.xlu0 %406
        %410 = vset.pattern.permute.xlu0 0
        %411 = vperm.xlu0 %410, %v301
        %v412 = vpop.permute.xlu0 %411
        %415 = vset.pattern.permute.xlu0 0
        %416 = vperm.xlu0 %415, %v302
        %v417 = vpop.permute.xlu0 %416
        %420 = vset.pattern.permute.xlu0 0
        %421 = vperm.xlu0 %420, %v303
        %v422 = vpop.permute.xlu0 %421
        %425 = vset.pattern.permute.xlu0 0
        %426 = vperm.xlu0 %425, %v304
        %v427 = vpop.permute.xlu0 %426
        %430 = vset.pattern.permute.xlu0 0
        %431 = vperm.xlu0 %430, %v305
        %v432 = vpop.permute.xlu0 %431
        %435 = vset.pattern.permute.xlu0 0
        %436 = vperm.xlu0 %435, %v306
        %v437 = vpop.permute.xlu0 %436
        %440 = vset.pattern.permute.xlu0 0
        %441 = vperm.xlu0 %440, %v307
        %v442 = vpop.permute.xlu0 %441
        %445 = vset.pattern.permute.xlu0 0
        %446 = vperm.xlu0 %445, %v308
        %v447 = vpop.permute.xlu0 %446
        %450 = vset.pattern.permute.xlu0 0
        %451 = vperm.xlu0 %450, %v309
        %v452 = vpop.permute.xlu0 %451
        %455 = vset.pattern.permute.xlu0 0
        %456 = vperm.xlu0 %455, %v310
        %v457 = vpop.permute.xlu0 %456
        %460 = vset.pattern.permute.xlu0 0
        %461 = vperm.xlu0 %460, %v311
        %v462 = vpop.permute.xlu0 %461
        %465 = vset.pattern.permute.xlu0 0
        %466 = vperm.xlu0 %465, %v312
        %v467 = vpop.permute.xlu0 %466
        %470 = vset.pattern.permute.xlu0 0
        %471 = vperm.xlu0 %470, %v313
        %v472 = vpop.permute.xlu0 %471
        %475 = vset.pattern.permute.xlu0 0
        %476 = vperm.xlu0 %475, %v314
        %v477 = vpop.permute.xlu0 %476
        %480 = vset.pattern.permute.xlu0 0
        %481 = vperm.xlu0 %480, %v315
        %v482 = vpop.permute.xlu0 %481
        %485 = vset.pattern.permute.xlu0 0
        %486 = vperm.xlu0 %485, %v316
        %v487 = vpop.permute.xlu0 %486
        %490 = vset.pattern.permute.xlu0 0
        %491 = vperm.xlu0 %490, %v317
        %v492 = vpop.permute.xlu0 %491
        %495 = vset.pattern.permute.xlu0 0
        %496 = vperm.xlu0 %495, %v318
        %v497 = vpop.permute.xlu0 %496
        %500 = vset.pattern.permute.xlu0 0
        %501 = vperm.xlu0 %500, %v319
        %v502 = vpop.permute.xlu0 %501
        %505 = vset.pattern.permute.xlu0 0
        %506 = vperm.xlu0 %505, %v320
        %v507 = vpop.permute.xlu0 %506
        %510 = vset.pattern.permute.xlu0 0
        %511 = vperm.xlu0 %510, %v321
        %v512 = vpop.permute.xlu0 %511
        %515 = vset.pattern.permute.xlu0 0
        %516 = vperm.xlu0 %515, %v322
        %v517 = vpop.permute.xlu0 %516
        %520 = vset.pattern.permute.xlu0 0
        %521 = vperm.xlu0 %520, %v323
        %v522 = vpop.permute.xlu0 %521
        %525 = vset.pattern.permute.xlu0 0
        %526 = vperm.xlu0 %525, %v324
        %v527 = vpop.permute.xlu0 %526
        %530 = vset.pattern.permute.xlu0 0
        %531 = vperm.xlu0 %530, %v325
        %v532 = vpop.permute.xlu0 %531
        %535 = vset.pattern.permute.xlu0 0
        %536 = vperm.xlu0 %535, %v326
        %v537 = vpop.permute.xlu0 %536
        %540 = vset.pattern.permute.xlu0 0
        %541 = vperm.xlu0 %540, %v327
        %v542 = vpop.permute.xlu0 %541
        %545 = vset.pattern.permute.xlu0 0
        %546 = vperm.xlu0 %545, %v328
        %v547 = vpop.permute.xlu0 %546
        %550 = vset.pattern.permute.xlu0 0
        %551 = vperm.xlu0 %550, %v329
        %v552 = vpop.permute.xlu0 %551
        %555 = vset.pattern.permute.xlu0 0
        %556 = vperm.xlu0 %555, %v330
        %v557 = vpop.permute.xlu0 %556
        %560 = vset.pattern.permute.xlu0 0
        %561 = vperm.xlu0 %560, %v331
        %v562 = vpop.permute.xlu0 %561
        %565 = vset.pattern.permute.xlu0 0
        %566 = vperm.xlu0 %565, %v332
        %v567 = vpop.permute.xlu0 %566
        %570 = vset.pattern.permute.xlu0 0
        %571 = vperm.xlu0 %570, %v333
        %v572 = vpop.permute.xlu0 %571
        %575 = vset.pattern.permute.xlu0 0
        %576 = vperm.xlu0 %575, %v334
        %v577 = vpop.permute.xlu0 %576
        %580 = vset.pattern.permute.xlu0 0
        %581 = vperm.xlu0 %580, %v335
        %v582 = vpop.permute.xlu0 %581
        %585 = vset.pattern.permute.xlu0 0
        %586 = vperm.xlu0 %585, %v336
        %v587 = vpop.permute.xlu0 %586
        %590 = vset.pattern.permute.xlu0 0
        %591 = vperm.xlu0 %590, %v337
        %v592 = vpop.permute.xlu0 %591
        %595 = vset.pattern.permute.xlu0 0
        %596 = vperm.xlu0 %595, %v338
        %v597 = vpop.permute.xlu0 %596
        %600 = vset.pattern.permute.xlu0 0
        %601 = vperm.xlu0 %600, %v339
        %v602 = vpop.permute.xlu0 %601
        %605 = vset.pattern.permute.xlu0 0
        %606 = vperm.xlu0 %605, %v340
        %v607 = vpop.permute.xlu0 %606
        %610 = vset.pattern.permute.xlu0 0
        %611 = vperm.xlu0 %610, %v341
        %v612 = vpop.permute.xlu0 %611
        %615 = vset.pattern.permute.xlu0 0
        %616 = vperm.xlu0 %615, %v342
        %v617 = vpop.permute.xlu0 %616
        %620 = vset.pattern.permute.xlu0 0
        %621 = vperm.xlu0 %620, %v343
        %v622 = vpop.permute.xlu0 %621
        %625 = vset.pattern.permute.xlu0 0
        %626 = vperm.xlu0 %625, %v344
        %v627 = vpop.permute.xlu0 %626
        %630 = vset.pattern.permute.xlu0 0
        %631 = vperm.xlu0 %630, %v345
        %v632 = vpop.permute.xlu0 %631
        %635 = vset.pattern.permute.xlu0 0
        %636 = vperm.xlu0 %635, %v346
        %v637 = vpop.permute.xlu0 %636
        %640 = vset.pattern.permute.xlu0 0
        %641 = vperm.xlu0 %640, %v347
        %v642 = vpop.permute.xlu0 %641
        %645 = vset.pattern.permute.xlu0 0
        %646 = vperm.xlu0 %645, %v348
        %v647 = vpop.permute.xlu0 %646
        %650 = vset.pattern.permute.xlu0 0
        %651 = vperm.xlu0 %650, %v349
        %v652 = vpop.permute.xlu0 %651
        %655 = vset.pattern.permute.xlu0 0
        %656 = vperm.xlu0 %655, %v350
        %v657 = vpop.permute.xlu0 %656
        %660 = vset.pattern.permute.xlu0 0
        %661 = vperm.xlu0 %660, %v351
        %v662 = vpop.permute.xlu0 %661
        %665 = vset.pattern.permute.xlu0 0
        %666 = vperm.xlu0 %665, %v352
        %v667 = vpop.permute.xlu0 %666
        %670 = vset.pattern.permute.xlu0 0
        %671 = vperm.xlu0 %670, %v353
        %v672 = vpop.permute.xlu0 %671
        %v674 = vlaneseq
        %v675 = vshrl.u32 %v674, 7
        %v676 = vsub.s32 0, %v675
        %v677 = vrot.slane %v289, %v676
        %v678 = vsub.f32 %v357, %v677
        %v679 = vsub.f32 %v362, %v677
        %v680 = vsub.f32 %v367, %v677
        %v681 = vsub.f32 %v372, %v677
        %v682 = vsub.f32 %v377, %v677
        %v683 = vsub.f32 %v382, %v677
        %v684 = vsub.f32 %v387, %v677
        %v685 = vsub.f32 %v392, %v677
        %v686 = vsub.f32 %v397, %v677
        %v687 = vsub.f32 %v402, %v677
        %v688 = vsub.f32 %v407, %v677
        %v689 = vsub.f32 %v412, %v677
        %v690 = vsub.f32 %v417, %v677
        %v691 = vsub.f32 %v422, %v677
        %v692 = vsub.f32 %v427, %v677
        %v693 = vsub.f32 %v432, %v677
        %v694 = vsub.f32 %v437, %v677
        %v695 = vsub.f32 %v442, %v677
        %v696 = vsub.f32 %v447, %v677
        %v697 = vsub.f32 %v452, %v677
        %v698 = vsub.f32 %v457, %v677
        %v699 = vsub.f32 %v462, %v677
        %v700 = vsub.f32 %v467, %v677
        %v701 = vsub.f32 %v472, %v677
        %v702 = vsub.f32 %v477, %v677
        %v703 = vsub.f32 %v482, %v677
        %v704 = vsub.f32 %v487, %v677
        %v705 = vsub.f32 %v492, %v677
        %v706 = vsub.f32 %v497, %v677
        %v707 = vsub.f32 %v502, %v677
        %v708 = vsub.f32 %v507, %v677
        %v709 = vsub.f32 %v512, %v677
        %v710 = vsub.f32 %v517, %v677
        %v711 = vsub.f32 %v522, %v677
        %v712 = vsub.f32 %v527, %v677
        %v713 = vsub.f32 %v532, %v677
        %v714 = vsub.f32 %v537, %v677
        %v715 = vsub.f32 %v542, %v677
        %v716 = vsub.f32 %v547, %v677
        %v717 = vsub.f32 %v552, %v677
        %v718 = vsub.f32 %v557, %v677
        %v719 = vsub.f32 %v562, %v677
        %v720 = vsub.f32 %v567, %v677
        %v721 = vsub.f32 %v572, %v677
        %v722 = vsub.f32 %v577, %v677
        %v723 = vsub.f32 %v582, %v677
        %v724 = vsub.f32 %v587, %v677
        %v725 = vsub.f32 %v592, %v677
        %v726 = vsub.f32 %v597, %v677
        %v727 = vsub.f32 %v602, %v677
        %v728 = vsub.f32 %v607, %v677
        %v729 = vsub.f32 %v612, %v677
        %v730 = vsub.f32 %v617, %v677
        %v731 = vsub.f32 %v622, %v677
        %v732 = vsub.f32 %v627, %v677
        %v733 = vsub.f32 %v632, %v677
        %v734 = vsub.f32 %v637, %v677
        %v735 = vsub.f32 %v642, %v677
        %v736 = vsub.f32 %v647, %v677
        %v737 = vsub.f32 %v652, %v677
        %v738 = vsub.f32 %v657, %v677
        %v739 = vsub.f32 %v662, %v677
        %v740 = vsub.f32 %v667, %v677
        %v741 = vsub.f32 %v672, %v677
        %v742 = vand.u32 2147483647, %v678
        %v743 = vand.u32 2147483647, %v679
        %v744 = vand.u32 2147483647, %v680
        %v745 = vand.u32 2147483647, %v681
        %v746 = vand.u32 2147483647, %v682
        %v747 = vand.u32 2147483647, %v683
        %v748 = vand.u32 2147483647, %v684
        %v749 = vand.u32 2147483647, %v685
        %v750 = vand.u32 2147483647, %v686
        %v751 = vand.u32 2147483647, %v687
        %v752 = vand.u32 2147483647, %v688
        %v753 = vand.u32 2147483647, %v689
        %v754 = vand.u32 2147483647, %v690
        %v755 = vand.u32 2147483647, %v691
        %v756 = vand.u32 2147483647, %v692
        %v757 = vand.u32 2147483647, %v693
        %v758 = vand.u32 2147483647, %v694
        %v759 = vand.u32 2147483647, %v695
        %v760 = vand.u32 2147483647, %v696
        %v761 = vand.u32 2147483647, %v697
        %v762 = vand.u32 2147483647, %v698
        %v763 = vand.u32 2147483647, %v699
        %v764 = vand.u32 2147483647, %v700
        %v765 = vand.u32 2147483647, %v701
        %v766 = vand.u32 2147483647, %v702
        %v767 = vand.u32 2147483647, %v703
        %v768 = vand.u32 2147483647, %v704
        %v769 = vand.u32 2147483647, %v705
        %v770 = vand.u32 2147483647, %v706
        %v771 = vand.u32 2147483647, %v707
        %v772 = vand.u32 2147483647, %v708
        %v773 = vand.u32 2147483647, %v709
        %v774 = vand.u32 2147483647, %v710
        %v775 = vand.u32 2147483647, %v711
        %v776 = vand.u32 2147483647, %v712
        %v777 = vand.u32 2147483647, %v713
        %v778 = vand.u32 2147483647, %v714
        %v779 = vand.u32 2147483647, %v715
        %v780 = vand.u32 2147483647, %v716
        %v781 = vand.u32 2147483647, %v717
        %v782 = vand.u32 2147483647, %v718
        %v783 = vand.u32 2147483647, %v719
        %v784 = vand.u32 2147483647, %v720
        %v785 = vand.u32 2147483647, %v721
        %v786 = vand.u32 2147483647, %v722
        %v787 = vand.u32 2147483647, %v723
        %v788 = vand.u32 2147483647, %v724
        %v789 = vand.u32 2147483647, %v725
        %v790 = vand.u32 2147483647, %v726
        %v791 = vand.u32 2147483647, %v727
        %v792 = vand.u32 2147483647, %v728
        %v793 = vand.u32 2147483647, %v729
        %v794 = vand.u32 2147483647, %v730
        %v795 = vand.u32 2147483647, %v731
        %v796 = vand.u32 2147483647, %v732
        %v797 = vand.u32 2147483647, %v733
        %v798 = vand.u32 2147483647, %v734
        %v799 = vand.u32 2147483647, %v735
        %v800 = vand.u32 2147483647, %v736
        %v801 = vand.u32 2147483647, %v737
        %v802 = vand.u32 2147483647, %v738
        %v803 = vand.u32 2147483647, %v739
        %v804 = vand.u32 2147483647, %v740
        %v805 = vand.u32 2147483647, %v741
        %v806 = vsub.f32 1.0, %v742
        %v807 = vsub.f32 1.0, %v743
        %v808 = vsub.f32 1.0, %v744
        %v809 = vsub.f32 1.0, %v745
        %v810 = vsub.f32 1.0, %v746
        %v811 = vsub.f32 1.0, %v747
        %v812 = vsub.f32 1.0, %v748
        %v813 = vsub.f32 1.0, %v749
        %v814 = vsub.f32 1.0, %v750
        %v815 = vsub.f32 1.0, %v751
        %v816 = vsub.f32 1.0, %v752
        %v817 = vsub.f32 1.0, %v753
        %v818 = vsub.f32 1.0, %v754
        %v819 = vsub.f32 1.0, %v755
        %v820 = vsub.f32 1.0, %v756
        %v821 = vsub.f32 1.0, %v757
        %v822 = vsub.f32 1.0, %v758
        %v823 = vsub.f32 1.0, %v759
        %v824 = vsub.f32 1.0, %v760
        %v825 = vsub.f32 1.0, %v761
        %v826 = vsub.f32 1.0, %v762
        %v827 = vsub.f32 1.0, %v763
        %v828 = vsub.f32 1.0, %v764
        %v829 = vsub.f32 1.0, %v765
        %v830 = vsub.f32 1.0, %v766
        %v831 = vsub.f32 1.0, %v767
        %v832 = vsub.f32 1.0, %v768
        %v833 = vsub.f32 1.0, %v769
        %v834 = vsub.f32 1.0, %v770
        %v835 = vsub.f32 1.0, %v771
        %v836 = vsub.f32 1.0, %v772
        %v837 = vsub.f32 1.0, %v773
        %v838 = vsub.f32 1.0, %v774
        %v839 = vsub.f32 1.0, %v775
        %v840 = vsub.f32 1.0, %v776
        %v841 = vsub.f32 1.0, %v777
        %v842 = vsub.f32 1.0, %v778
        %v843 = vsub.f32 1.0, %v779
        %v844 = vsub.f32 1.0, %v780
        %v845 = vsub.f32 1.0, %v781
        %v846 = vsub.f32 1.0, %v782
        %v847 = vsub.f32 1.0, %v783
        %v848 = vsub.f32 1.0, %v784
        %v849 = vsub.f32 1.0, %v785
        %v850 = vsub.f32 1.0, %v786
        %v851 = vsub.f32 1.0, %v787
        %v852 = vsub.f32 1.0, %v788
        %v853 = vsub.f32 1.0, %v789
        %v854 = vsub.f32 1.0, %v790
        %v855 = vsub.f32 1.0, %v791
        %v856 = vsub.f32 1.0, %v792
        %v857 = vsub.f32 1.0, %v793
        %v858 = vsub.f32 1.0, %v794
        %v859 = vsub.f32 1.0, %v795
        %v860 = vsub.f32 1.0, %v796
        %v861 = vsub.f32 1.0, %v797
        %v862 = vsub.f32 1.0, %v798
        %v863 = vsub.f32 1.0, %v799
        %v864 = vsub.f32 1.0, %v800
        %v865 = vsub.f32 1.0, %v801
        %v866 = vsub.f32 1.0, %v802
        %v867 = vsub.f32 1.0, %v803
        %v868 = vsub.f32 1.0, %v804
        %v869 = vsub.f32 1.0, %v805
        %v870 = vmax.f32 %v806, 0.0
        %v871 = vmax.f32 %v807, 0.0
        %v872 = vmax.f32 %v808, 0.0
        %v873 = vmax.f32 %v809, 0.0
        %v874 = vmax.f32 %v810, 0.0
        %v875 = vmax.f32 %v811, 0.0
        %v876 = vmax.f32 %v812, 0.0
        %v877 = vmax.f32 %v813, 0.0
        %v878 = vmax.f32 %v814, 0.0
        %v879 = vmax.f32 %v815, 0.0
        %v880 = vmax.f32 %v816, 0.0
        %v881 = vmax.f32 %v817, 0.0
        %v882 = vmax.f32 %v818, 0.0
        %v883 = vmax.f32 %v819, 0.0
        %v884 = vmax.f32 %v820, 0.0
        %v885 = vmax.f32 %v821, 0.0
        %v886 = vmax.f32 %v822, 0.0
        %v887 = vmax.f32 %v823, 0.0
        %v888 = vmax.f32 %v824, 0.0
        %v889 = vmax.f32 %v825, 0.0
        %v890 = vmax.f32 %v826, 0.0
        %v891 = vmax.f32 %v827, 0.0
        %v892 = vmax.f32 %v828, 0.0
        %v893 = vmax.f32 %v829, 0.0
        %v894 = vmax.f32 %v830, 0.0
        %v895 = vmax.f32 %v831, 0.0
        %v896 = vmax.f32 %v832, 0.0
        %v897 = vmax.f32 %v833, 0.0
        %v898 = vmax.f32 %v834, 0.0
        %v899 = vmax.f32 %v835, 0.0
        %v900 = vmax.f32 %v836, 0.0
        %v901 = vmax.f32 %v837, 0.0
        %v902 = vmax.f32 %v838, 0.0
        %v903 = vmax.f32 %v839, 0.0
        %v904 = vmax.f32 %v840, 0.0
        %v905 = vmax.f32 %v841, 0.0
        %v906 = vmax.f32 %v842, 0.0
        %v907 = vmax.f32 %v843, 0.0
        %v908 = vmax.f32 %v844, 0.0
        %v909 = vmax.f32 %v845, 0.0
        %v910 = vmax.f32 %v846, 0.0
        %v911 = vmax.f32 %v847, 0.0
        %v912 = vmax.f32 %v848, 0.0
        %v913 = vmax.f32 %v849, 0.0
        %v914 = vmax.f32 %v850, 0.0
        %v915 = vmax.f32 %v851, 0.0
        %v916 = vmax.f32 %v852, 0.0
        %v917 = vmax.f32 %v853, 0.0
        %v918 = vmax.f32 %v854, 0.0
        %v919 = vmax.f32 %v855, 0.0
        %v920 = vmax.f32 %v856, 0.0
        %v921 = vmax.f32 %v857, 0.0
        %v922 = vmax.f32 %v858, 0.0
        %v923 = vmax.f32 %v859, 0.0
        %v924 = vmax.f32 %v860, 0.0
        %v925 = vmax.f32 %v861, 0.0
        %v926 = vmax.f32 %v862, 0.0
        %v927 = vmax.f32 %v863, 0.0
        %v928 = vmax.f32 %v864, 0.0
        %v929 = vmax.f32 %v865, 0.0
        %v930 = vmax.f32 %v866, 0.0
        %v931 = vmax.f32 %v867, 0.0
        %v932 = vmax.f32 %v868, 0.0
        %v933 = vmax.f32 %v869, 0.0
        %934 = vset.pattern.permute.xlu0 1
        %935 = vperm.xlu0 %934, %v290
        %v936 = vpop.permute.xlu0 %935
        %938 = vset.pattern.permute.xlu0 1
        %939 = vperm.xlu0 %938, %v291
        %v940 = vpop.permute.xlu0 %939
        %942 = vset.pattern.permute.xlu0 1
        %943 = vperm.xlu0 %942, %v292
        %v944 = vpop.permute.xlu0 %943
        %946 = vset.pattern.permute.xlu0 1
        %947 = vperm.xlu0 %946, %v293
        %v948 = vpop.permute.xlu0 %947
        %950 = vset.pattern.permute.xlu0 1
        %951 = vperm.xlu0 %950, %v294
        %v952 = vpop.permute.xlu0 %951
        %954 = vset.pattern.permute.xlu0 1
        %955 = vperm.xlu0 %954, %v295
        %v956 = vpop.permute.xlu0 %955
        %958 = vset.pattern.permute.xlu0 1
        %959 = vperm.xlu0 %958, %v296
        %v960 = vpop.permute.xlu0 %959
        %962 = vset.pattern.permute.xlu0 1
        %963 = vperm.xlu0 %962, %v297
        %v964 = vpop.permute.xlu0 %963
        %966 = vset.pattern.permute.xlu0 1
        %967 = vperm.xlu0 %966, %v298
        %v968 = vpop.permute.xlu0 %967
        %970 = vset.pattern.permute.xlu0 1
        %971 = vperm.xlu0 %970, %v299
        %v972 = vpop.permute.xlu0 %971
        %974 = vset.pattern.permute.xlu0 1
        %975 = vperm.xlu0 %974, %v300
        %v976 = vpop.permute.xlu0 %975
        %978 = vset.pattern.permute.xlu0 1
        %979 = vperm.xlu0 %978, %v301
        %v980 = vpop.permute.xlu0 %979
        %982 = vset.pattern.permute.xlu0 1
        %983 = vperm.xlu0 %982, %v302
        %v984 = vpop.permute.xlu0 %983
        %986 = vset.pattern.permute.xlu0 1
        %987 = vperm.xlu0 %986, %v303
        %v988 = vpop.permute.xlu0 %987
        %990 = vset.pattern.permute.xlu0 1
        %991 = vperm.xlu0 %990, %v304
        %v992 = vpop.permute.xlu0 %991
        %994 = vset.pattern.permute.xlu0 1
        %995 = vperm.xlu0 %994, %v305
        %v996 = vpop.permute.xlu0 %995
        %998 = vset.pattern.permute.xlu0 1
        %999 = vperm.xlu0 %998, %v306
        %v1000 = vpop.permute.xlu0 %999
        %1002 = vset.pattern.permute.xlu0 1
        %1003 = vperm.xlu0 %1002, %v307
        %v1004 = vpop.permute.xlu0 %1003
        %1006 = vset.pattern.permute.xlu0 1
        %1007 = vperm.xlu0 %1006, %v308
        %v1008 = vpop.permute.xlu0 %1007
        %1010 = vset.pattern.permute.xlu0 1
        %1011 = vperm.xlu0 %1010, %v309
        %v1012 = vpop.permute.xlu0 %1011
        %1014 = vset.pattern.permute.xlu0 1
        %1015 = vperm.xlu0 %1014, %v310
        %v1016 = vpop.permute.xlu0 %1015
        %1018 = vset.pattern.permute.xlu0 1
        %1019 = vperm.xlu0 %1018, %v311
        %v1020 = vpop.permute.xlu0 %1019
        %1022 = vset.pattern.permute.xlu0 1
        %1023 = vperm.xlu0 %1022, %v312
        %v1024 = vpop.permute.xlu0 %1023
        %1026 = vset.pattern.permute.xlu0 1
        %1027 = vperm.xlu0 %1026, %v313
        %v1028 = vpop.permute.xlu0 %1027
        %1030 = vset.pattern.permute.xlu0 1
        %1031 = vperm.xlu0 %1030, %v314
        %v1032 = vpop.permute.xlu0 %1031
        %1034 = vset.pattern.permute.xlu0 1
        %1035 = vperm.xlu0 %1034, %v315
        %v1036 = vpop.permute.xlu0 %1035
        %1038 = vset.pattern.permute.xlu0 1
        %1039 = vperm.xlu0 %1038, %v316
        %v1040 = vpop.permute.xlu0 %1039
        %1042 = vset.pattern.permute.xlu0 1
        %1043 = vperm.xlu0 %1042, %v317
        %v1044 = vpop.permute.xlu0 %1043
        %1046 = vset.pattern.permute.xlu0 1
        %1047 = vperm.xlu0 %1046, %v318
        %v1048 = vpop.permute.xlu0 %1047
        %1050 = vset.pattern.permute.xlu0 1
        %1051 = vperm.xlu0 %1050, %v319
        %v1052 = vpop.permute.xlu0 %1051
        %1054 = vset.pattern.permute.xlu0 1
        %1055 = vperm.xlu0 %1054, %v320
        %v1056 = vpop.permute.xlu0 %1055
        %1058 = vset.pattern.permute.xlu0 1
        %1059 = vperm.xlu0 %1058, %v321
        %v1060 = vpop.permute.xlu0 %1059
        %1062 = vset.pattern.permute.xlu0 1
        %1063 = vperm.xlu0 %1062, %v322
        %v1064 = vpop.permute.xlu0 %1063
        %1066 = vset.pattern.permute.xlu0 1
        %1067 = vperm.xlu0 %1066, %v323
        %v1068 = vpop.permute.xlu0 %1067
        %1070 = vset.pattern.permute.xlu0 1
        %1071 = vperm.xlu0 %1070, %v324
        %v1072 = vpop.permute.xlu0 %1071
        %1074 = vset.pattern.permute.xlu0 1
        %1075 = vperm.xlu0 %1074, %v325
        %v1076 = vpop.permute.xlu0 %1075
        %1078 = vset.pattern.permute.xlu0 1
        %1079 = vperm.xlu0 %1078, %v326
        %v1080 = vpop.permute.xlu0 %1079
        %1082 = vset.pattern.permute.xlu0 1
        %1083 = vperm.xlu0 %1082, %v327
        %v1084 = vpop.permute.xlu0 %1083
        %1086 = vset.pattern.permute.xlu0 1
        %1087 = vperm.xlu0 %1086, %v328
        %v1088 = vpop.permute.xlu0 %1087
        %1090 = vset.pattern.permute.xlu0 1
        %1091 = vperm.xlu0 %1090, %v329
        %v1092 = vpop.permute.xlu0 %1091
        %1094 = vset.pattern.permute.xlu0 1
        %1095 = vperm.xlu0 %1094, %v330
        %v1096 = vpop.permute.xlu0 %1095
        %1098 = vset.pattern.permute.xlu0 1
        %1099 = vperm.xlu0 %1098, %v331
        %v1100 = vpop.permute.xlu0 %1099
        %1102 = vset.pattern.permute.xlu0 1
        %1103 = vperm.xlu0 %1102, %v332
        %v1104 = vpop.permute.xlu0 %1103
        %1106 = vset.pattern.permute.xlu0 1
        %1107 = vperm.xlu0 %1106, %v333
        %v1108 = vpop.permute.xlu0 %1107
        %1110 = vset.pattern.permute.xlu0 1
        %1111 = vperm.xlu0 %1110, %v334
        %v1112 = vpop.permute.xlu0 %1111
        %1114 = vset.pattern.permute.xlu0 1
        %1115 = vperm.xlu0 %1114, %v335
        %v1116 = vpop.permute.xlu0 %1115
        %1118 = vset.pattern.permute.xlu0 1
        %1119 = vperm.xlu0 %1118, %v336
        %v1120 = vpop.permute.xlu0 %1119
        %1122 = vset.pattern.permute.xlu0 1
        %1123 = vperm.xlu0 %1122, %v337
        %v1124 = vpop.permute.xlu0 %1123
        %1126 = vset.pattern.permute.xlu0 1
        %1127 = vperm.xlu0 %1126, %v338
        %v1128 = vpop.permute.xlu0 %1127
        %1130 = vset.pattern.permute.xlu0 1
        %1131 = vperm.xlu0 %1130, %v339
        %v1132 = vpop.permute.xlu0 %1131
        %1134 = vset.pattern.permute.xlu0 1
        %1135 = vperm.xlu0 %1134, %v340
        %v1136 = vpop.permute.xlu0 %1135
        %1138 = vset.pattern.permute.xlu0 1
        %1139 = vperm.xlu0 %1138, %v341
        %v1140 = vpop.permute.xlu0 %1139
        %1142 = vset.pattern.permute.xlu0 1
        %1143 = vperm.xlu0 %1142, %v342
        %v1144 = vpop.permute.xlu0 %1143
        %1146 = vset.pattern.permute.xlu0 1
        %1147 = vperm.xlu0 %1146, %v343
        %v1148 = vpop.permute.xlu0 %1147
        %1150 = vset.pattern.permute.xlu0 1
        %1151 = vperm.xlu0 %1150, %v344
        %v1152 = vpop.permute.xlu0 %1151
        %1154 = vset.pattern.permute.xlu0 1
        %1155 = vperm.xlu0 %1154, %v345
        %v1156 = vpop.permute.xlu0 %1155
        %1158 = vset.pattern.permute.xlu0 1
        %1159 = vperm.xlu0 %1158, %v346
        %v1160 = vpop.permute.xlu0 %1159
        %1162 = vset.pattern.permute.xlu0 1
        %1163 = vperm.xlu0 %1162, %v347
        %v1164 = vpop.permute.xlu0 %1163
        %1166 = vset.pattern.permute.xlu0 1
        %1167 = vperm.xlu0 %1166, %v348
        %v1168 = vpop.permute.xlu0 %1167
        %1170 = vset.pattern.permute.xlu0 1
        %1171 = vperm.xlu0 %1170, %v349
        %v1172 = vpop.permute.xlu0 %1171
        %1174 = vset.pattern.permute.xlu0 1
        %1175 = vperm.xlu0 %1174, %v350
        %v1176 = vpop.permute.xlu0 %1175
        %1178 = vset.pattern.permute.xlu0 1
        %1179 = vperm.xlu0 %1178, %v351
        %v1180 = vpop.permute.xlu0 %1179
        %1182 = vset.pattern.permute.xlu0 1
        %1183 = vperm.xlu0 %1182, %v352
        %v1184 = vpop.permute.xlu0 %1183
        %1186 = vset.pattern.permute.xlu0 1
        %1187 = vperm.xlu0 %1186, %v353
        %v1188 = vpop.permute.xlu0 %1187
        %v1190 = vlaneseq
        %v1191 = vshrl.u32 %v1190, 7
        %v1192 = vsub.s32 1, %v1191
        %v1193 = vrot.slane %v289, %v1192
        %v1194 = vsub.f32 %v936, %v1193
        %v1195 = vsub.f32 %v940, %v1193
        %v1196 = vsub.f32 %v944, %v1193
        %v1197 = vsub.f32 %v948, %v1193
        %v1198 = vsub.f32 %v952, %v1193
        %v1199 = vsub.f32 %v956, %v1193
        %v1200 = vsub.f32 %v960, %v1193
        %v1201 = vsub.f32 %v964, %v1193
        %v1202 = vsub.f32 %v968, %v1193
        %v1203 = vsub.f32 %v972, %v1193
        %v1204 = vsub.f32 %v976, %v1193
        %v1205 = vsub.f32 %v980, %v1193
        %v1206 = vsub.f32 %v984, %v1193
        %v1207 = vsub.f32 %v988, %v1193
        %v1208 = vsub.f32 %v992, %v1193
        %v1209 = vsub.f32 %v996, %v1193
        %v1210 = vsub.f32 %v1000, %v1193
        %v1211 = vsub.f32 %v1004, %v1193
        %v1212 = vsub.f32 %v1008, %v1193
        %v1213 = vsub.f32 %v1012, %v1193
        %v1214 = vsub.f32 %v1016, %v1193
        %v1215 = vsub.f32 %v1020, %v1193
        %v1216 = vsub.f32 %v1024, %v1193
        %v1217 = vsub.f32 %v1028, %v1193
        %v1218 = vsub.f32 %v1032, %v1193
        %v1219 = vsub.f32 %v1036, %v1193
        %v1220 = vsub.f32 %v1040, %v1193
        %v1221 = vsub.f32 %v1044, %v1193
        %v1222 = vsub.f32 %v1048, %v1193
        %v1223 = vsub.f32 %v1052, %v1193
        %v1224 = vsub.f32 %v1056, %v1193
        %v1225 = vsub.f32 %v1060, %v1193
        %v1226 = vsub.f32 %v1064, %v1193
        %v1227 = vsub.f32 %v1068, %v1193
        %v1228 = vsub.f32 %v1072, %v1193
        %v1229 = vsub.f32 %v1076, %v1193
        %v1230 = vsub.f32 %v1080, %v1193
        %v1231 = vsub.f32 %v1084, %v1193
        %v1232 = vsub.f32 %v1088, %v1193
        %v1233 = vsub.f32 %v1092, %v1193
        %v1234 = vsub.f32 %v1096, %v1193
        %v1235 = vsub.f32 %v1100, %v1193
        %v1236 = vsub.f32 %v1104, %v1193
        %v1237 = vsub.f32 %v1108, %v1193
        %v1238 = vsub.f32 %v1112, %v1193
        %v1239 = vsub.f32 %v1116, %v1193
        %v1240 = vsub.f32 %v1120, %v1193
        %v1241 = vsub.f32 %v1124, %v1193
        %v1242 = vsub.f32 %v1128, %v1193
        %v1243 = vsub.f32 %v1132, %v1193
        %v1244 = vsub.f32 %v1136, %v1193
        %v1245 = vsub.f32 %v1140, %v1193
        %v1246 = vsub.f32 %v1144, %v1193
        %v1247 = vsub.f32 %v1148, %v1193
        %v1248 = vsub.f32 %v1152, %v1193
        %v1249 = vsub.f32 %v1156, %v1193
        %v1250 = vsub.f32 %v1160, %v1193
        %v1251 = vsub.f32 %v1164, %v1193
        %v1252 = vsub.f32 %v1168, %v1193
        %v1253 = vsub.f32 %v1172, %v1193
        %v1254 = vsub.f32 %v1176, %v1193
        %v1255 = vsub.f32 %v1180, %v1193
        %v1256 = vsub.f32 %v1184, %v1193
        %v1257 = vsub.f32 %v1188, %v1193
        %v1258 = vand.u32 2147483647, %v1194
        %v1259 = vand.u32 2147483647, %v1195
        %v1260 = vand.u32 2147483647, %v1196
        %v1261 = vand.u32 2147483647, %v1197
        %v1262 = vand.u32 2147483647, %v1198
        %v1263 = vand.u32 2147483647, %v1199
        %v1264 = vand.u32 2147483647, %v1200
        %v1265 = vand.u32 2147483647, %v1201
        %v1266 = vand.u32 2147483647, %v1202
        %v1267 = vand.u32 2147483647, %v1203
        %v1268 = vand.u32 2147483647, %v1204
        %v1269 = vand.u32 2147483647, %v1205
        %v1270 = vand.u32 2147483647, %v1206
        %v1271 = vand.u32 2147483647, %v1207
        %v1272 = vand.u32 2147483647, %v1208
        %v1273 = vand.u32 2147483647, %v1209
        %v1274 = vand.u32 2147483647, %v1210
        %v1275 = vand.u32 2147483647, %v1211
        %v1276 = vand.u32 2147483647, %v1212
        %v1277 = vand.u32 2147483647, %v1213
        %v1278 = vand.u32 2147483647, %v1214
        %v1279 = vand.u32 2147483647, %v1215
        %v1280 = vand.u32 2147483647, %v1216
        %v1281 = vand.u32 2147483647, %v1217
        %v1282 = vand.u32 2147483647, %v1218
        %v1283 = vand.u32 2147483647, %v1219
        %v1284 = vand.u32 2147483647, %v1220
        %v1285 = vand.u32 2147483647, %v1221
        %v1286 = vand.u32 2147483647, %v1222
        %v1287 = vand.u32 2147483647, %v1223
        %v1288 = vand.u32 2147483647, %v1224
        %v1289 = vand.u32 2147483647, %v1225
        %v1290 = vand.u32 2147483647, %v1226
        %v1291 = vand.u32 2147483647, %v1227
        %v1292 = vand.u32 2147483647, %v1228
        %v1293 = vand.u32 2147483647, %v1229
        %v1294 = vand.u32 2147483647, %v1230
        %v1295 = vand.u32 2147483647, %v1231
        %v1296 = vand.u32 2147483647, %v1232
        %v1297 = vand.u32 2147483647, %v1233
        %v1298 = vand.u32 2147483647, %v1234
        %v1299 = vand.u32 2147483647, %v1235
        %v1300 = vand.u32 2147483647, %v1236
        %v1301 = vand.u32 2147483647, %v1237
        %v1302 = vand.u32 2147483647, %v1238
        %v1303 = vand.u32 2147483647, %v1239
        %v1304 = vand.u32 2147483647, %v1240
        %v1305 = vand.u32 2147483647, %v1241
        %v1306 = vand.u32 2147483647, %v1242
        %v1307 = vand.u32 2147483647, %v1243
        %v1308 = vand.u32 2147483647, %v1244
        %v1309 = vand.u32 2147483647, %v1245
        %v1310 = vand.u32 2147483647, %v1246
        %v1311 = vand.u32 2147483647, %v1247
        %v1312 = vand.u32 2147483647, %v1248
        %v1313 = vand.u32 2147483647, %v1249
        %v1314 = vand.u32 2147483647, %v1250
        %v1315 = vand.u32 2147483647, %v1251
        %v1316 = vand.u32 2147483647, %v1252
        %v1317 = vand.u32 2147483647, %v1253
        %v1318 = vand.u32 2147483647, %v1254
        %v1319 = vand.u32 2147483647, %v1255
        %v1320 = vand.u32 2147483647, %v1256
        %v1321 = vand.u32 2147483647, %v1257
        %v1322 = vsub.f32 1.0, %v1258
        %v1323 = vsub.f32 1.0, %v1259
        %v1324 = vsub.f32 1.0, %v1260
        %v1325 = vsub.f32 1.0, %v1261
        %v1326 = vsub.f32 1.0, %v1262
        %v1327 = vsub.f32 1.0, %v1263
        %v1328 = vsub.f32 1.0, %v1264
        %v1329 = vsub.f32 1.0, %v1265
        %v1330 = vsub.f32 1.0, %v1266
        %v1331 = vsub.f32 1.0, %v1267
        %v1332 = vsub.f32 1.0, %v1268
        %v1333 = vsub.f32 1.0, %v1269
        %v1334 = vsub.f32 1.0, %v1270
        %v1335 = vsub.f32 1.0, %v1271
        %v1336 = vsub.f32 1.0, %v1272
        %v1337 = vsub.f32 1.0, %v1273
        %v1338 = vsub.f32 1.0, %v1274
        %v1339 = vsub.f32 1.0, %v1275
        %v1340 = vsub.f32 1.0, %v1276
        %v1341 = vsub.f32 1.0, %v1277
        %v1342 = vsub.f32 1.0, %v1278
        %v1343 = vsub.f32 1.0, %v1279
        %v1344 = vsub.f32 1.0, %v1280
        %v1345 = vsub.f32 1.0, %v1281
        %v1346 = vsub.f32 1.0, %v1282
        %v1347 = vsub.f32 1.0, %v1283
        %v1348 = vsub.f32 1.0, %v1284
        %v1349 = vsub.f32 1.0, %v1285
        %v1350 = vsub.f32 1.0, %v1286
        %v1351 = vsub.f32 1.0, %v1287
        %v1352 = vsub.f32 1.0, %v1288
        %v1353 = vsub.f32 1.0, %v1289
        %v1354 = vsub.f32 1.0, %v1290
        %v1355 = vsub.f32 1.0, %v1291
        %v1356 = vsub.f32 1.0, %v1292
        %v1357 = vsub.f32 1.0, %v1293
        %v1358 = vsub.f32 1.0, %v1294
        %v1359 = vsub.f32 1.0, %v1295
        %v1360 = vsub.f32 1.0, %v1296
        %v1361 = vsub.f32 1.0, %v1297
        %v1362 = vsub.f32 1.0, %v1298
        %v1363 = vsub.f32 1.0, %v1299
        %v1364 = vsub.f32 1.0, %v1300
        %v1365 = vsub.f32 1.0, %v1301
        %v1366 = vsub.f32 1.0, %v1302
        %v1367 = vsub.f32 1.0, %v1303
        %v1368 = vsub.f32 1.0, %v1304
        %v1369 = vsub.f32 1.0, %v1305
        %v1370 = vsub.f32 1.0, %v1306
        %v1371 = vsub.f32 1.0, %v1307
        %v1372 = vsub.f32 1.0, %v1308
        %v1373 = vsub.f32 1.0, %v1309
        %v1374 = vsub.f32 1.0, %v1310
        %v1375 = vsub.f32 1.0, %v1311
        %v1376 = vsub.f32 1.0, %v1312
        %v1377 = vsub.f32 1.0, %v1313
        %v1378 = vsub.f32 1.0, %v1314
        %v1379 = vsub.f32 1.0, %v1315
        %v1380 = vsub.f32 1.0, %v1316
        %v1381 = vsub.f32 1.0, %v1317
        %v1382 = vsub.f32 1.0, %v1318
        %v1383 = vsub.f32 1.0, %v1319
        %v1384 = vsub.f32 1.0, %v1320
        %v1385 = vsub.f32 1.0, %v1321
        %v1386 = vmax.f32 %v1322, 0.0
        %v1387 = vmax.f32 %v1323, 0.0
        %v1388 = vmax.f32 %v1324, 0.0
        %v1389 = vmax.f32 %v1325, 0.0
        %v1390 = vmax.f32 %v1326, 0.0
        %v1391 = vmax.f32 %v1327, 0.0
        %v1392 = vmax.f32 %v1328, 0.0
        %v1393 = vmax.f32 %v1329, 0.0
        %v1394 = vmax.f32 %v1330, 0.0
        %v1395 = vmax.f32 %v1331, 0.0
        %v1396 = vmax.f32 %v1332, 0.0
        %v1397 = vmax.f32 %v1333, 0.0
        %v1398 = vmax.f32 %v1334, 0.0
        %v1399 = vmax.f32 %v1335, 0.0
        %v1400 = vmax.f32 %v1336, 0.0
        %v1401 = vmax.f32 %v1337, 0.0
        %v1402 = vmax.f32 %v1338, 0.0
        %v1403 = vmax.f32 %v1339, 0.0
        %v1404 = vmax.f32 %v1340, 0.0
        %v1405 = vmax.f32 %v1341, 0.0
        %v1406 = vmax.f32 %v1342, 0.0
        %v1407 = vmax.f32 %v1343, 0.0
        %v1408 = vmax.f32 %v1344, 0.0
        %v1409 = vmax.f32 %v1345, 0.0
        %v1410 = vmax.f32 %v1346, 0.0
        %v1411 = vmax.f32 %v1347, 0.0
        %v1412 = vmax.f32 %v1348, 0.0
        %v1413 = vmax.f32 %v1349, 0.0
        %v1414 = vmax.f32 %v1350, 0.0
        %v1415 = vmax.f32 %v1351, 0.0
        %v1416 = vmax.f32 %v1352, 0.0
        %v1417 = vmax.f32 %v1353, 0.0
        %v1418 = vmax.f32 %v1354, 0.0
        %v1419 = vmax.f32 %v1355, 0.0
        %v1420 = vmax.f32 %v1356, 0.0
        %v1421 = vmax.f32 %v1357, 0.0
        %v1422 = vmax.f32 %v1358, 0.0
        %v1423 = vmax.f32 %v1359, 0.0
        %v1424 = vmax.f32 %v1360, 0.0
        %v1425 = vmax.f32 %v1361, 0.0
        %v1426 = vmax.f32 %v1362, 0.0
        %v1427 = vmax.f32 %v1363, 0.0
        %v1428 = vmax.f32 %v1364, 0.0
        %v1429 = vmax.f32 %v1365, 0.0
        %v1430 = vmax.f32 %v1366, 0.0
        %v1431 = vmax.f32 %v1367, 0.0
        %v1432 = vmax.f32 %v1368, 0.0
        %v1433 = vmax.f32 %v1369, 0.0
        %v1434 = vmax.f32 %v1370, 0.0
        %v1435 = vmax.f32 %v1371, 0.0
        %v1436 = vmax.f32 %v1372, 0.0
        %v1437 = vmax.f32 %v1373, 0.0
        %v1438 = vmax.f32 %v1374, 0.0
        %v1439 = vmax.f32 %v1375, 0.0
        %v1440 = vmax.f32 %v1376, 0.0
        %v1441 = vmax.f32 %v1377, 0.0
        %v1442 = vmax.f32 %v1378, 0.0
        %v1443 = vmax.f32 %v1379, 0.0
        %v1444 = vmax.f32 %v1380, 0.0
        %v1445 = vmax.f32 %v1381, 0.0
        %v1446 = vmax.f32 %v1382, 0.0
        %v1447 = vmax.f32 %v1383, 0.0
        %v1448 = vmax.f32 %v1384, 0.0
        %v1449 = vmax.f32 %v1385, 0.0
        %1450 = vset.pattern.permute.xlu0 2
        %1451 = vperm.xlu0 %1450, %v290
        %v1452 = vpop.permute.xlu0 %1451
        %1454 = vset.pattern.permute.xlu0 2
        %1455 = vperm.xlu0 %1454, %v291
        %v1456 = vpop.permute.xlu0 %1455
        %1458 = vset.pattern.permute.xlu0 2
        %1459 = vperm.xlu0 %1458, %v292
        %v1460 = vpop.permute.xlu0 %1459
        %1462 = vset.pattern.permute.xlu0 2
        %1463 = vperm.xlu0 %1462, %v293
        %v1464 = vpop.permute.xlu0 %1463
        %1466 = vset.pattern.permute.xlu0 2
        %1467 = vperm.xlu0 %1466, %v294
        %v1468 = vpop.permute.xlu0 %1467
        %1470 = vset.pattern.permute.xlu0 2
        %1471 = vperm.xlu0 %1470, %v295
        %v1472 = vpop.permute.xlu0 %1471
        %1474 = vset.pattern.permute.xlu0 2
        %1475 = vperm.xlu0 %1474, %v296
        %v1476 = vpop.permute.xlu0 %1475
        %1478 = vset.pattern.permute.xlu0 2
        %1479 = vperm.xlu0 %1478, %v297
        %v1480 = vpop.permute.xlu0 %1479
        %1482 = vset.pattern.permute.xlu0 2
        %1483 = vperm.xlu0 %1482, %v298
        %v1484 = vpop.permute.xlu0 %1483
        %1486 = vset.pattern.permute.xlu0 2
        %1487 = vperm.xlu0 %1486, %v299
        %v1488 = vpop.permute.xlu0 %1487
        %1490 = vset.pattern.permute.xlu0 2
        %1491 = vperm.xlu0 %1490, %v300
        %v1492 = vpop.permute.xlu0 %1491
        %1494 = vset.pattern.permute.xlu0 2
        %1495 = vperm.xlu0 %1494, %v301
        %v1496 = vpop.permute.xlu0 %1495
        %1498 = vset.pattern.permute.xlu0 2
        %1499 = vperm.xlu0 %1498, %v302
        %v1500 = vpop.permute.xlu0 %1499
        %1502 = vset.pattern.permute.xlu0 2
        %1503 = vperm.xlu0 %1502, %v303
        %v1504 = vpop.permute.xlu0 %1503
        %1506 = vset.pattern.permute.xlu0 2
        %1507 = vperm.xlu0 %1506, %v304
        %v1508 = vpop.permute.xlu0 %1507
        %1510 = vset.pattern.permute.xlu0 2
        %1511 = vperm.xlu0 %1510, %v305
        %v1512 = vpop.permute.xlu0 %1511
        %1514 = vset.pattern.permute.xlu0 2
        %1515 = vperm.xlu0 %1514, %v306
        %v1516 = vpop.permute.xlu0 %1515
        %1518 = vset.pattern.permute.xlu0 2
        %1519 = vperm.xlu0 %1518, %v307
        %v1520 = vpop.permute.xlu0 %1519
        %1522 = vset.pattern.permute.xlu0 2
        %1523 = vperm.xlu0 %1522, %v308
        %v1524 = vpop.permute.xlu0 %1523
        %1526 = vset.pattern.permute.xlu0 2
        %1527 = vperm.xlu0 %1526, %v309
        %v1528 = vpop.permute.xlu0 %1527
        %1530 = vset.pattern.permute.xlu0 2
        %1531 = vperm.xlu0 %1530, %v310
        %v1532 = vpop.permute.xlu0 %1531
        %1534 = vset.pattern.permute.xlu0 2
        %1535 = vperm.xlu0 %1534, %v311
        %v1536 = vpop.permute.xlu0 %1535
        %1538 = vset.pattern.permute.xlu0 2
        %1539 = vperm.xlu0 %1538, %v312
        %v1540 = vpop.permute.xlu0 %1539
        %1542 = vset.pattern.permute.xlu0 2
        %1543 = vperm.xlu0 %1542, %v313
        %v1544 = vpop.permute.xlu0 %1543
        %1546 = vset.pattern.permute.xlu0 2
        %1547 = vperm.xlu0 %1546, %v314
        %v1548 = vpop.permute.xlu0 %1547
        %1550 = vset.pattern.permute.xlu0 2
        %1551 = vperm.xlu0 %1550, %v315
        %v1552 = vpop.permute.xlu0 %1551
        %1554 = vset.pattern.permute.xlu0 2
        %1555 = vperm.xlu0 %1554, %v316
        %v1556 = vpop.permute.xlu0 %1555
        %1558 = vset.pattern.permute.xlu0 2
        %1559 = vperm.xlu0 %1558, %v317
        %v1560 = vpop.permute.xlu0 %1559
        %1562 = vset.pattern.permute.xlu0 2
        %1563 = vperm.xlu0 %1562, %v318
        %v1564 = vpop.permute.xlu0 %1563
        %1566 = vset.pattern.permute.xlu0 2
        %1567 = vperm.xlu0 %1566, %v319
        %v1568 = vpop.permute.xlu0 %1567
        %1570 = vset.pattern.permute.xlu0 2
        %1571 = vperm.xlu0 %1570, %v320
        %v1572 = vpop.permute.xlu0 %1571
        %1574 = vset.pattern.permute.xlu0 2
        %1575 = vperm.xlu0 %1574, %v321
        %v1576 = vpop.permute.xlu0 %1575
        %1578 = vset.pattern.permute.xlu0 2
        %1579 = vperm.xlu0 %1578, %v322
        %v1580 = vpop.permute.xlu0 %1579
        %1582 = vset.pattern.permute.xlu0 2
        %1583 = vperm.xlu0 %1582, %v323
        %v1584 = vpop.permute.xlu0 %1583
        %1586 = vset.pattern.permute.xlu0 2
        %1587 = vperm.xlu0 %1586, %v324
        %v1588 = vpop.permute.xlu0 %1587
        %1590 = vset.pattern.permute.xlu0 2
        %1591 = vperm.xlu0 %1590, %v325
        %v1592 = vpop.permute.xlu0 %1591
        %1594 = vset.pattern.permute.xlu0 2
        %1595 = vperm.xlu0 %1594, %v326
        %v1596 = vpop.permute.xlu0 %1595
        %1598 = vset.pattern.permute.xlu0 2
        %1599 = vperm.xlu0 %1598, %v327
        %v1600 = vpop.permute.xlu0 %1599
        %1602 = vset.pattern.permute.xlu0 2
        %1603 = vperm.xlu0 %1602, %v328
        %v1604 = vpop.permute.xlu0 %1603
        %1606 = vset.pattern.permute.xlu0 2
        %1607 = vperm.xlu0 %1606, %v329
        %v1608 = vpop.permute.xlu0 %1607
        %1610 = vset.pattern.permute.xlu0 2
        %1611 = vperm.xlu0 %1610, %v330
        %v1612 = vpop.permute.xlu0 %1611
        %1614 = vset.pattern.permute.xlu0 2
        %1615 = vperm.xlu0 %1614, %v331
        %v1616 = vpop.permute.xlu0 %1615
        %1618 = vset.pattern.permute.xlu0 2
        %1619 = vperm.xlu0 %1618, %v332
        %v1620 = vpop.permute.xlu0 %1619
        %1622 = vset.pattern.permute.xlu0 2
        %1623 = vperm.xlu0 %1622, %v333
        %v1624 = vpop.permute.xlu0 %1623
        %1626 = vset.pattern.permute.xlu0 2
        %1627 = vperm.xlu0 %1626, %v334
        %v1628 = vpop.permute.xlu0 %1627
        %1630 = vset.pattern.permute.xlu0 2
        %1631 = vperm.xlu0 %1630, %v335
        %v1632 = vpop.permute.xlu0 %1631
        %1634 = vset.pattern.permute.xlu0 2
        %1635 = vperm.xlu0 %1634, %v336
        %v1636 = vpop.permute.xlu0 %1635
        %1638 = vset.pattern.permute.xlu0 2
        %1639 = vperm.xlu0 %1638, %v337
        %v1640 = vpop.permute.xlu0 %1639
        %1642 = vset.pattern.permute.xlu0 2
        %1643 = vperm.xlu0 %1642, %v338
        %v1644 = vpop.permute.xlu0 %1643
        %1646 = vset.pattern.permute.xlu0 2
        %1647 = vperm.xlu0 %1646, %v339
        %v1648 = vpop.permute.xlu0 %1647
        %1650 = vset.pattern.permute.xlu0 2
        %1651 = vperm.xlu0 %1650, %v340
        %v1652 = vpop.permute.xlu0 %1651
        %1654 = vset.pattern.permute.xlu0 2
        %1655 = vperm.xlu0 %1654, %v341
        %v1656 = vpop.permute.xlu0 %1655
        %1658 = vset.pattern.permute.xlu0 2
        %1659 = vperm.xlu0 %1658, %v342
        %v1660 = vpop.permute.xlu0 %1659
        %1662 = vset.pattern.permute.xlu0 2
        %1663 = vperm.xlu0 %1662, %v343
        %v1664 = vpop.permute.xlu0 %1663
        %1666 = vset.pattern.permute.xlu0 2
        %1667 = vperm.xlu0 %1666, %v344
        %v1668 = vpop.permute.xlu0 %1667
        %1670 = vset.pattern.permute.xlu0 2
        %1671 = vperm.xlu0 %1670, %v345
        %v1672 = vpop.permute.xlu0 %1671
        %1674 = vset.pattern.permute.xlu0 2
        %1675 = vperm.xlu0 %1674, %v346
        %v1676 = vpop.permute.xlu0 %1675
        %1678 = vset.pattern.permute.xlu0 2
        %1679 = vperm.xlu0 %1678, %v347
        %v1680 = vpop.permute.xlu0 %1679
        %1682 = vset.pattern.permute.xlu0 2
        %1683 = vperm.xlu0 %1682, %v348
        %v1684 = vpop.permute.xlu0 %1683
        %1686 = vset.pattern.permute.xlu0 2
        %1687 = vperm.xlu0 %1686, %v349
        %v1688 = vpop.permute.xlu0 %1687
        %1690 = vset.pattern.permute.xlu0 2
        %1691 = vperm.xlu0 %1690, %v350
        %v1692 = vpop.permute.xlu0 %1691
        %1694 = vset.pattern.permute.xlu0 2
        %1695 = vperm.xlu0 %1694, %v351
        %v1696 = vpop.permute.xlu0 %1695
        %1698 = vset.pattern.permute.xlu0 2
        %1699 = vperm.xlu0 %1698, %v352
        %v1700 = vpop.permute.xlu0 %1699
        %1702 = vset.pattern.permute.xlu0 2
        %1703 = vperm.xlu0 %1702, %v353
        %v1704 = vpop.permute.xlu0 %1703
        %v1706 = vlaneseq
        %v1707 = vshrl.u32 %v1706, 7
        %v1708 = vsub.s32 2, %v1707
        %v1709 = vrot.slane %v289, %v1708
        %v1710 = vsub.f32 %v1452, %v1709
        %v1711 = vsub.f32 %v1456, %v1709
        %v1712 = vsub.f32 %v1460, %v1709
        %v1713 = vsub.f32 %v1464, %v1709
        %v1714 = vsub.f32 %v1468, %v1709
        %v1715 = vsub.f32 %v1472, %v1709
        %v1716 = vsub.f32 %v1476, %v1709
        %v1717 = vsub.f32 %v1480, %v1709
        %v1718 = vsub.f32 %v1484, %v1709
        %v1719 = vsub.f32 %v1488, %v1709
        %v1720 = vsub.f32 %v1492, %v1709
        %v1721 = vsub.f32 %v1496, %v1709
        %v1722 = vsub.f32 %v1500, %v1709
        %v1723 = vsub.f32 %v1504, %v1709
        %v1724 = vsub.f32 %v1508, %v1709
        %v1725 = vsub.f32 %v1512, %v1709
        %v1726 = vsub.f32 %v1516, %v1709
        %v1727 = vsub.f32 %v1520, %v1709
        %v1728 = vsub.f32 %v1524, %v1709
        %v1729 = vsub.f32 %v1528, %v1709
        %v1730 = vsub.f32 %v1532, %v1709
        %v1731 = vsub.f32 %v1536, %v1709
        %v1732 = vsub.f32 %v1540, %v1709
        %v1733 = vsub.f32 %v1544, %v1709
        %v1734 = vsub.f32 %v1548, %v1709
        %v1735 = vsub.f32 %v1552, %v1709
        %v1736 = vsub.f32 %v1556, %v1709
        %v1737 = vsub.f32 %v1560, %v1709
        %v1738 = vsub.f32 %v1564, %v1709
        %v1739 = vsub.f32 %v1568, %v1709
        %v1740 = vsub.f32 %v1572, %v1709
        %v1741 = vsub.f32 %v1576, %v1709
        %v1742 = vsub.f32 %v1580, %v1709
        %v1743 = vsub.f32 %v1584, %v1709
        %v1744 = vsub.f32 %v1588, %v1709
        %v1745 = vsub.f32 %v1592, %v1709
        %v1746 = vsub.f32 %v1596, %v1709
        %v1747 = vsub.f32 %v1600, %v1709
        %v1748 = vsub.f32 %v1604, %v1709
        %v1749 = vsub.f32 %v1608, %v1709
        %v1750 = vsub.f32 %v1612, %v1709
        %v1751 = vsub.f32 %v1616, %v1709
        %v1752 = vsub.f32 %v1620, %v1709
        %v1753 = vsub.f32 %v1624, %v1709
        %v1754 = vsub.f32 %v1628, %v1709
        %v1755 = vsub.f32 %v1632, %v1709
        %v1756 = vsub.f32 %v1636, %v1709
        %v1757 = vsub.f32 %v1640, %v1709
        %v1758 = vsub.f32 %v1644, %v1709
        %v1759 = vsub.f32 %v1648, %v1709
        %v1760 = vsub.f32 %v1652, %v1709
        %v1761 = vsub.f32 %v1656, %v1709
        %v1762 = vsub.f32 %v1660, %v1709
        %v1763 = vsub.f32 %v1664, %v1709
        %v1764 = vsub.f32 %v1668, %v1709
        %v1765 = vsub.f32 %v1672, %v1709
        %v1766 = vsub.f32 %v1676, %v1709
        %v1767 = vsub.f32 %v1680, %v1709
        %v1768 = vsub.f32 %v1684, %v1709
        %v1769 = vsub.f32 %v1688, %v1709
        %v1770 = vsub.f32 %v1692, %v1709
        %v1771 = vsub.f32 %v1696, %v1709
        %v1772 = vsub.f32 %v1700, %v1709
        %v1773 = vsub.f32 %v1704, %v1709
        %v1774 = vand.u32 2147483647, %v1710
        %v1775 = vand.u32 2147483647, %v1711
        %v1776 = vand.u32 2147483647, %v1712
        %v1777 = vand.u32 2147483647, %v1713
        %v1778 = vand.u32 2147483647, %v1714
        %v1779 = vand.u32 2147483647, %v1715
        %v1780 = vand.u32 2147483647, %v1716
        %v1781 = vand.u32 2147483647, %v1717
        %v1782 = vand.u32 2147483647, %v1718
        %v1783 = vand.u32 2147483647, %v1719
        %v1784 = vand.u32 2147483647, %v1720
        %v1785 = vand.u32 2147483647, %v1721
        %v1786 = vand.u32 2147483647, %v1722
        %v1787 = vand.u32 2147483647, %v1723
        %v1788 = vand.u32 2147483647, %v1724
        %v1789 = vand.u32 2147483647, %v1725
        %v1790 = vand.u32 2147483647, %v1726
        %v1791 = vand.u32 2147483647, %v1727
        %v1792 = vand.u32 2147483647, %v1728
        %v1793 = vand.u32 2147483647, %v1729
        %v1794 = vand.u32 2147483647, %v1730
        %v1795 = vand.u32 2147483647, %v1731
        %v1796 = vand.u32 2147483647, %v1732
        %v1797 = vand.u32 2147483647, %v1733
        %v1798 = vand.u32 2147483647, %v1734
        %v1799 = vand.u32 2147483647, %v1735
        %v1800 = vand.u32 2147483647, %v1736
        %v1801 = vand.u32 2147483647, %v1737
        %v1802 = vand.u32 2147483647, %v1738
        %v1803 = vand.u32 2147483647, %v1739
        %v1804 = vand.u32 2147483647, %v1740
        %v1805 = vand.u32 2147483647, %v1741
        %v1806 = vand.u32 2147483647, %v1742
        %v1807 = vand.u32 2147483647, %v1743
        %v1808 = vand.u32 2147483647, %v1744
        %v1809 = vand.u32 2147483647, %v1745
        %v1810 = vand.u32 2147483647, %v1746
        %v1811 = vand.u32 2147483647, %v1747
        %v1812 = vand.u32 2147483647, %v1748
        %v1813 = vand.u32 2147483647, %v1749
        %v1814 = vand.u32 2147483647, %v1750
        %v1815 = vand.u32 2147483647, %v1751
        %v1816 = vand.u32 2147483647, %v1752
        %v1817 = vand.u32 2147483647, %v1753
        %v1818 = vand.u32 2147483647, %v1754
        %v1819 = vand.u32 2147483647, %v1755
        %v1820 = vand.u32 2147483647, %v1756
        %v1821 = vand.u32 2147483647, %v1757
        %v1822 = vand.u32 2147483647, %v1758
        %v1823 = vand.u32 2147483647, %v1759
        %v1824 = vand.u32 2147483647, %v1760
        %v1825 = vand.u32 2147483647, %v1761
        %v1826 = vand.u32 2147483647, %v1762
        %v1827 = vand.u32 2147483647, %v1763
        %v1828 = vand.u32 2147483647, %v1764
        %v1829 = vand.u32 2147483647, %v1765
        %v1830 = vand.u32 2147483647, %v1766
        %v1831 = vand.u32 2147483647, %v1767
        %v1832 = vand.u32 2147483647, %v1768
        %v1833 = vand.u32 2147483647, %v1769
        %v1834 = vand.u32 2147483647, %v1770
        %v1835 = vand.u32 2147483647, %v1771
        %v1836 = vand.u32 2147483647, %v1772
        %v1837 = vand.u32 2147483647, %v1773
        %v1838 = vsub.f32 1.0, %v1774
        %v1839 = vsub.f32 1.0, %v1775
        %v1840 = vsub.f32 1.0, %v1776
        %v1841 = vsub.f32 1.0, %v1777
        %v1842 = vsub.f32 1.0, %v1778
        %v1843 = vsub.f32 1.0, %v1779
        %v1844 = vsub.f32 1.0, %v1780
        %v1845 = vsub.f32 1.0, %v1781
        %v1846 = vsub.f32 1.0, %v1782
        %v1847 = vsub.f32 1.0, %v1783
        %v1848 = vsub.f32 1.0, %v1784
        %v1849 = vsub.f32 1.0, %v1785
        %v1850 = vsub.f32 1.0, %v1786
        %v1851 = vsub.f32 1.0, %v1787
        %v1852 = vsub.f32 1.0, %v1788
        %v1853 = vsub.f32 1.0, %v1789
        %v1854 = vsub.f32 1.0, %v1790
        %v1855 = vsub.f32 1.0, %v1791
        %v1856 = vsub.f32 1.0, %v1792
        %v1857 = vsub.f32 1.0, %v1793
        %v1858 = vsub.f32 1.0, %v1794
        %v1859 = vsub.f32 1.0, %v1795
        %v1860 = vsub.f32 1.0, %v1796
        %v1861 = vsub.f32 1.0, %v1797
        %v1862 = vsub.f32 1.0, %v1798
        %v1863 = vsub.f32 1.0, %v1799
        %v1864 = vsub.f32 1.0, %v1800
        %v1865 = vsub.f32 1.0, %v1801
        %v1866 = vsub.f32 1.0, %v1802
        %v1867 = vsub.f32 1.0, %v1803
        %v1868 = vsub.f32 1.0, %v1804
        %v1869 = vsub.f32 1.0, %v1805
        %v1870 = vsub.f32 1.0, %v1806
        %v1871 = vsub.f32 1.0, %v1807
        %v1872 = vsub.f32 1.0, %v1808
        %v1873 = vsub.f32 1.0, %v1809
        %v1874 = vsub.f32 1.0, %v1810
        %v1875 = vsub.f32 1.0, %v1811
        %v1876 = vsub.f32 1.0, %v1812
        %v1877 = vsub.f32 1.0, %v1813
        %v1878 = vsub.f32 1.0, %v1814
        %v1879 = vsub.f32 1.0, %v1815
        %v1880 = vsub.f32 1.0, %v1816
        %v1881 = vsub.f32 1.0, %v1817
        %v1882 = vsub.f32 1.0, %v1818
        %v1883 = vsub.f32 1.0, %v1819
        %v1884 = vsub.f32 1.0, %v1820
        %v1885 = vsub.f32 1.0, %v1821
        %v1886 = vsub.f32 1.0, %v1822
        %v1887 = vsub.f32 1.0, %v1823
        %v1888 = vsub.f32 1.0, %v1824
        %v1889 = vsub.f32 1.0, %v1825
        %v1890 = vsub.f32 1.0, %v1826
        %v1891 = vsub.f32 1.0, %v1827
        %v1892 = vsub.f32 1.0, %v1828
        %v1893 = vsub.f32 1.0, %v1829
        %v1894 = vsub.f32 1.0, %v1830
        %v1895 = vsub.f32 1.0, %v1831
        %v1896 = vsub.f32 1.0, %v1832
        %v1897 = vsub.f32 1.0, %v1833
        %v1898 = vsub.f32 1.0, %v1834
        %v1899 = vsub.f32 1.0, %v1835
        %v1900 = vsub.f32 1.0, %v1836
        %v1901 = vsub.f32 1.0, %v1837
        %v1902 = vmax.f32 %v1838, 0.0
        %v1903 = vmax.f32 %v1839, 0.0
        %v1904 = vmax.f32 %v1840, 0.0
        %v1905 = vmax.f32 %v1841, 0.0
        %v1906 = vmax.f32 %v1842, 0.0
        %v1907 = vmax.f32 %v1843, 0.0
        %v1908 = vmax.f32 %v1844, 0.0
        %v1909 = vmax.f32 %v1845, 0.0
        %v1910 = vmax.f32 %v1846, 0.0
        %v1911 = vmax.f32 %v1847, 0.0
        %v1912 = vmax.f32 %v1848, 0.0
        %v1913 = vmax.f32 %v1849, 0.0
        %v1914 = vmax.f32 %v1850, 0.0
        %v1915 = vmax.f32 %v1851, 0.0
        %v1916 = vmax.f32 %v1852, 0.0
        %v1917 = vmax.f32 %v1853, 0.0
        %v1918 = vmax.f32 %v1854, 0.0
        %v1919 = vmax.f32 %v1855, 0.0
        %v1920 = vmax.f32 %v1856, 0.0
        %v1921 = vmax.f32 %v1857, 0.0
        %v1922 = vmax.f32 %v1858, 0.0
        %v1923 = vmax.f32 %v1859, 0.0
        %v1924 = vmax.f32 %v1860, 0.0
        %v1925 = vmax.f32 %v1861, 0.0
        %v1926 = vmax.f32 %v1862, 0.0
        %v1927 = vmax.f32 %v1863, 0.0
        %v1928 = vmax.f32 %v1864, 0.0
        %v1929 = vmax.f32 %v1865, 0.0
        %v1930 = vmax.f32 %v1866, 0.0
        %v1931 = vmax.f32 %v1867, 0.0
        %v1932 = vmax.f32 %v1868, 0.0
        %v1933 = vmax.f32 %v1869, 0.0
        %v1934 = vmax.f32 %v1870, 0.0
        %v1935 = vmax.f32 %v1871, 0.0
        %v1936 = vmax.f32 %v1872, 0.0
        %v1937 = vmax.f32 %v1873, 0.0
        %v1938 = vmax.f32 %v1874, 0.0
        %v1939 = vmax.f32 %v1875, 0.0
        %v1940 = vmax.f32 %v1876, 0.0
        %v1941 = vmax.f32 %v1877, 0.0
        %v1942 = vmax.f32 %v1878, 0.0
        %v1943 = vmax.f32 %v1879, 0.0
        %v1944 = vmax.f32 %v1880, 0.0
        %v1945 = vmax.f32 %v1881, 0.0
        %v1946 = vmax.f32 %v1882, 0.0
        %v1947 = vmax.f32 %v1883, 0.0
        %v1948 = vmax.f32 %v1884, 0.0
        %v1949 = vmax.f32 %v1885, 0.0
        %v1950 = vmax.f32 %v1886, 0.0
        %v1951 = vmax.f32 %v1887, 0.0
        %v1952 = vmax.f32 %v1888, 0.0
        %v1953 = vmax.f32 %v1889, 0.0
        %v1954 = vmax.f32 %v1890, 0.0
        %v1955 = vmax.f32 %v1891, 0.0
        %v1956 = vmax.f32 %v1892, 0.0
        %v1957 = vmax.f32 %v1893, 0.0
        %v1958 = vmax.f32 %v1894, 0.0
        %v1959 = vmax.f32 %v1895, 0.0
        %v1960 = vmax.f32 %v1896, 0.0
        %v1961 = vmax.f32 %v1897, 0.0
        %v1962 = vmax.f32 %v1898, 0.0
        %v1963 = vmax.f32 %v1899, 0.0
        %v1964 = vmax.f32 %v1900, 0.0
        %v1965 = vmax.f32 %v1901, 0.0
        %v1966 = vmul.f32 %v870, %v1386
        %v1967 = vmul.f32 %v871, %v1387
        %v1968 = vmul.f32 %v872, %v1388
        %v1969 = vmul.f32 %v873, %v1389
        %v1970 = vmul.f32 %v874, %v1390
        %v1971 = vmul.f32 %v875, %v1391
        %v1972 = vmul.f32 %v876, %v1392
        %v1973 = vmul.f32 %v877, %v1393
        %v1974 = vmul.f32 %v878, %v1394
        %v1975 = vmul.f32 %v879, %v1395
        %v1976 = vmul.f32 %v880, %v1396
        %v1977 = vmul.f32 %v881, %v1397
        %v1978 = vmul.f32 %v882, %v1398
        %v1979 = vmul.f32 %v883, %v1399
        %v1980 = vmul.f32 %v884, %v1400
        %v1981 = vmul.f32 %v885, %v1401
        %v1982 = vmul.f32 %v886, %v1402
        %v1983 = vmul.f32 %v887, %v1403
        %v1984 = vmul.f32 %v888, %v1404
        %v1985 = vmul.f32 %v889, %v1405
        %v1986 = vmul.f32 %v890, %v1406
        %v1987 = vmul.f32 %v891, %v1407
        %v1988 = vmul.f32 %v892, %v1408
        %v1989 = vmul.f32 %v893, %v1409
        %v1990 = vmul.f32 %v894, %v1410
        %v1991 = vmul.f32 %v895, %v1411
        %v1992 = vmul.f32 %v896, %v1412
        %v1993 = vmul.f32 %v897, %v1413
        %v1994 = vmul.f32 %v898, %v1414
        %v1995 = vmul.f32 %v899, %v1415
        %v1996 = vmul.f32 %v900, %v1416
        %v1997 = vmul.f32 %v901, %v1417
        %v1998 = vmul.f32 %v902, %v1418
        %v1999 = vmul.f32 %v903, %v1419
        %v2000 = vmul.f32 %v904, %v1420
        %v2001 = vmul.f32 %v905, %v1421
        %v2002 = vmul.f32 %v906, %v1422
        %v2003 = vmul.f32 %v907, %v1423
        %v2004 = vmul.f32 %v908, %v1424
        %v2005 = vmul.f32 %v909, %v1425
        %v2006 = vmul.f32 %v910, %v1426
        %v2007 = vmul.f32 %v911, %v1427
        %v2008 = vmul.f32 %v912, %v1428
        %v2009 = vmul.f32 %v913, %v1429
        %v2010 = vmul.f32 %v914, %v1430
        %v2011 = vmul.f32 %v915, %v1431
        %v2012 = vmul.f32 %v916, %v1432
        %v2013 = vmul.f32 %v917, %v1433
        %v2014 = vmul.f32 %v918, %v1434
        %v2015 = vmul.f32 %v919, %v1435
        %v2016 = vmul.f32 %v920, %v1436
        %v2017 = vmul.f32 %v921, %v1437
        %v2018 = vmul.f32 %v922, %v1438
        %v2019 = vmul.f32 %v923, %v1439
        %v2020 = vmul.f32 %v924, %v1440
        %v2021 = vmul.f32 %v925, %v1441
        %v2022 = vmul.f32 %v926, %v1442
        %v2023 = vmul.f32 %v927, %v1443
        %v2024 = vmul.f32 %v928, %v1444
        %v2025 = vmul.f32 %v929, %v1445
        %v2026 = vmul.f32 %v930, %v1446
        %v2027 = vmul.f32 %v931, %v1447
        %v2028 = vmul.f32 %v932, %v1448
        %v2029 = vmul.f32 %v933, %v1449
        %v2030 = vmul.f32 %v1966, %v1902
        %v2031 = vmul.f32 %v1967, %v1903
        %v2032 = vmul.f32 %v1968, %v1904
        %v2033 = vmul.f32 %v1969, %v1905
        %v2034 = vmul.f32 %v1970, %v1906
        %v2035 = vmul.f32 %v1971, %v1907
        %v2036 = vmul.f32 %v1972, %v1908
        %v2037 = vmul.f32 %v1973, %v1909
        %v2038 = vmul.f32 %v1974, %v1910
        %v2039 = vmul.f32 %v1975, %v1911
        %v2040 = vmul.f32 %v1976, %v1912
        %v2041 = vmul.f32 %v1977, %v1913
        %v2042 = vmul.f32 %v1978, %v1914
        %v2043 = vmul.f32 %v1979, %v1915
        %v2044 = vmul.f32 %v1980, %v1916
        %v2045 = vmul.f32 %v1981, %v1917
        %v2046 = vmul.f32 %v1982, %v1918
        %v2047 = vmul.f32 %v1983, %v1919
        %v2048 = vmul.f32 %v1984, %v1920
        %v2049 = vmul.f32 %v1985, %v1921
        %v2050 = vmul.f32 %v1986, %v1922
        %v2051 = vmul.f32 %v1987, %v1923
        %v2052 = vmul.f32 %v1988, %v1924
        %v2053 = vmul.f32 %v1989, %v1925
        %v2054 = vmul.f32 %v1990, %v1926
        %v2055 = vmul.f32 %v1991, %v1927
        %v2056 = vmul.f32 %v1992, %v1928
        %v2057 = vmul.f32 %v1993, %v1929
        %v2058 = vmul.f32 %v1994, %v1930
        %v2059 = vmul.f32 %v1995, %v1931
        %v2060 = vmul.f32 %v1996, %v1932
        %v2061 = vmul.f32 %v1997, %v1933
        %v2062 = vmul.f32 %v1998, %v1934
        %v2063 = vmul.f32 %v1999, %v1935
        %v2064 = vmul.f32 %v2000, %v1936
        %v2065 = vmul.f32 %v2001, %v1937
        %v2066 = vmul.f32 %v2002, %v1938
        %v2067 = vmul.f32 %v2003, %v1939
        %v2068 = vmul.f32 %v2004, %v1940
        %v2069 = vmul.f32 %v2005, %v1941
        %v2070 = vmul.f32 %v2006, %v1942
        %v2071 = vmul.f32 %v2007, %v1943
        %v2072 = vmul.f32 %v2008, %v1944
        %v2073 = vmul.f32 %v2009, %v1945
        %v2074 = vmul.f32 %v2010, %v1946
        %v2075 = vmul.f32 %v2011, %v1947
        %v2076 = vmul.f32 %v2012, %v1948
        %v2077 = vmul.f32 %v2013, %v1949
        %v2078 = vmul.f32 %v2014, %v1950
        %v2079 = vmul.f32 %v2015, %v1951
        %v2080 = vmul.f32 %v2016, %v1952
        %v2081 = vmul.f32 %v2017, %v1953
        %v2082 = vmul.f32 %v2018, %v1954
        %v2083 = vmul.f32 %v2019, %v1955
        %v2084 = vmul.f32 %v2020, %v1956
        %v2085 = vmul.f32 %v2021, %v1957
        %v2086 = vmul.f32 %v2022, %v1958
        %v2087 = vmul.f32 %v2023, %v1959
        %v2088 = vmul.f32 %v2024, %v1960
        %v2089 = vmul.f32 %v2025, %v1961
        %v2090 = vmul.f32 %v2026, %v1962
        %v2091 = vmul.f32 %v2027, %v1963
        %v2092 = vmul.f32 %v2028, %v1964
        %v2093 = vmul.f32 %v2029, %v1965
        %v2094 = vpack.c.bf16 %v2031, %v2030
        %v2095 = vpack.c.bf16 %v2033, %v2032
        %v2096 = vpack.c.bf16 %v2035, %v2034
        %v2097 = vpack.c.bf16 %v2037, %v2036
        %v2098 = vpack.c.bf16 %v2039, %v2038
        %v2099 = vpack.c.bf16 %v2041, %v2040
        %v2100 = vpack.c.bf16 %v2043, %v2042
        %v2101 = vpack.c.bf16 %v2045, %v2044
        %v2102 = vpack.c.bf16 %v2047, %v2046
        %v2103 = vpack.c.bf16 %v2049, %v2048
        %v2104 = vpack.c.bf16 %v2051, %v2050
        %v2105 = vpack.c.bf16 %v2053, %v2052
        %v2106 = vpack.c.bf16 %v2055, %v2054
        %v2107 = vpack.c.bf16 %v2057, %v2056
        %v2108 = vpack.c.bf16 %v2059, %v2058
        %v2109 = vpack.c.bf16 %v2061, %v2060
        %v2110 = vpack.c.bf16 %v2063, %v2062
        %v2111 = vpack.c.bf16 %v2065, %v2064
        %v2112 = vpack.c.bf16 %v2067, %v2066
        %v2113 = vpack.c.bf16 %v2069, %v2068
        %v2114 = vpack.c.bf16 %v2071, %v2070
        %v2115 = vpack.c.bf16 %v2073, %v2072
        %v2116 = vpack.c.bf16 %v2075, %v2074
        %v2117 = vpack.c.bf16 %v2077, %v2076
        %v2118 = vpack.c.bf16 %v2079, %v2078
        %v2119 = vpack.c.bf16 %v2081, %v2080
        %v2120 = vpack.c.bf16 %v2083, %v2082
        %v2121 = vpack.c.bf16 %v2085, %v2084
        %v2122 = vpack.c.bf16 %v2087, %v2086
        %v2123 = vpack.c.bf16 %v2089, %v2088
        %v2124 = vpack.c.bf16 %v2091, %v2090
        %v2125 = vpack.c.bf16 %v2093, %v2092
        %v2126 = vld [vmem:[%s268] sm:$0xff]
        %v2127 = vld [vmem:[%s268 + $0x8] sm:$0xff]
        %v2128 = vld [vmem:[%s268 + $0x10] sm:$0xff]
        %v2129 = vld [vmem:[%s268 + $0x18] sm:$0xff]
        %v2130 = vpack.c.bf16 %v2126, %v2126
        %v2131 = vpack.c.bf16 %v2127, %v2127
        %v2132 = vpack.c.bf16 %v2128, %v2128
        %v2133 = vpack.c.bf16 %v2129, %v2129
        %2134 = vmatprep.subr.bf16.mxu0 0
        %2135 = vmatpush1.bf16.msra.mxu0 %v2094
        %2136 = vmatprep.subr.bf16.mxu0 0
        %2137 = vmatpush1.bf16.msra.mxu0 %v2095
        %2138 = vmatprep.subr.bf16.mxu0 0
        %2139 = vmatpush1.bf16.msra.mxu0 %v2096
        %2140 = vmatprep.subr.bf16.mxu0 0
        %2141 = vmatpush1.bf16.msra.mxu0 %v2097
        %2142 = vmatprep.subr.bf16.mxu0 0
        %2143 = vmatpush1.bf16.msra.mxu0 %v2098
        %2144 = vmatprep.subr.bf16.mxu0 0
        %2145 = vmatpush1.bf16.msra.mxu0 %v2099
        %2146 = vmatprep.subr.bf16.mxu0 0
        %2147 = vmatpush1.bf16.msra.mxu0 %v2100
        %2148 = vmatprep.subr.bf16.mxu0 0
        %2149 = vmatpush1.bf16.msra.mxu0 %v2101
        %2150 = vmatprep.subr.bf16.mxu0 0
        %2151 = vmatpush1.bf16.msra.mxu0 %v2102
        %2152 = vmatprep.subr.bf16.mxu0 0
        %2153 = vmatpush1.bf16.msra.mxu0 %v2103
        %2154 = vmatprep.subr.bf16.mxu0 0
        %2155 = vmatpush1.bf16.msra.mxu0 %v2104
        %2156 = vmatprep.subr.bf16.mxu0 0
        %2157 = vmatpush1.bf16.msra.mxu0 %v2105
        %2158 = vmatprep.subr.bf16.mxu0 0
        %2159 = vmatpush1.bf16.msra.mxu0 %v2106
        %2160 = vmatprep.subr.bf16.mxu0 0
        %2161 = vmatpush1.bf16.msra.mxu0 %v2107
        %2162 = vmatprep.subr.bf16.mxu0 0
        %2163 = vmatpush1.bf16.msra.mxu0 %v2108
        %2164 = vmatprep.subr.bf16.mxu0 0
        %2165 = vmatpush1.bf16.msra.mxu0 %v2109
        %2166 = vmatprep.mubr.bf16.mxu0 %v2131
        %2167 = vmatmul.mubr.bf16.gmra.mrb[0].mxu0 %v2130
        %v2168 = vpop.f32.mrb[0].mxu0
        %v2169 = vadd.f32 0.0, %v2168
        %v2170 = vpop.f32.mrb[0].mxu0
        %v2171 = vpop.f32.mrb[0].mxu0
        %v2172 = vpop.f32.mrb[0].mxu0
        %2173 = vdwg.mxu0
        %2174 = vmatprep.subr.bf16.mxu0 0
        %2175 = vmatpush1.bf16.msra.mxu0 %v2110
        %2176 = vmatprep.subr.bf16.mxu0 0
        %2177 = vmatpush1.bf16.msra.mxu0 %v2111
        %2178 = vmatprep.subr.bf16.mxu0 0
        %2179 = vmatpush1.bf16.msra.mxu0 %v2112
        %2180 = vmatprep.subr.bf16.mxu0 0
        %2181 = vmatpush1.bf16.msra.mxu0 %v2113
        %2182 = vmatprep.subr.bf16.mxu0 0
        %2183 = vmatpush1.bf16.msra.mxu0 %v2114
        %2184 = vmatprep.subr.bf16.mxu0 0
        %2185 = vmatpush1.bf16.msra.mxu0 %v2115
        %2186 = vmatprep.subr.bf16.mxu0 0
        %2187 = vmatpush1.bf16.msra.mxu0 %v2116
        %2188 = vmatprep.subr.bf16.mxu0 0
        %2189 = vmatpush1.bf16.msra.mxu0 %v2117
        %2190 = vmatprep.subr.bf16.mxu0 0
        %2191 = vmatpush1.bf16.msra.mxu0 %v2118
        %2192 = vmatprep.subr.bf16.mxu0 0
        %2193 = vmatpush1.bf16.msra.mxu0 %v2119
        %2194 = vmatprep.subr.bf16.mxu0 0
        %2195 = vmatpush1.bf16.msra.mxu0 %v2120
        %2196 = vmatprep.subr.bf16.mxu0 0
        %2197 = vmatpush1.bf16.msra.mxu0 %v2121
        %2198 = vmatprep.subr.bf16.mxu0 0
        %2199 = vmatpush1.bf16.msra.mxu0 %v2122
        %2200 = vmatprep.subr.bf16.mxu0 0
        %2201 = vmatpush1.bf16.msra.mxu0 %v2123
        %2202 = vmatprep.subr.bf16.mxu0 0
        %2203 = vmatpush1.bf16.msra.mxu0 %v2124
        %2204 = vmatprep.subr.bf16.mxu0 0
        %2205 = vmatpush1.bf16.msra.mxu0 %v2125
        %2206 = vmatprep.mubr.bf16.mxu0 %v2133
        %2207 = vmatmul.mubr.bf16.gmra.mrb[0].mxu0 %v2132
        %v2208 = vpop.f32.mrb[0].mxu0
        %v2209 = vadd.f32 %v2169, %v2208
        %v2210 = vpop.f32.mrb[0].mxu0
        %v2211 = vpop.f32.mrb[0].mxu0
        %v2212 = vpop.f32.mrb[0].mxu0
        %2213 = vdwg.mxu0
        %v2214 = vld [vmem:[%s251] sm:$0xff]
        %v2215 = vadd.f32 %v2214, %v2209
        %2216 = vst [vmem:[%s251] sm:$0xff] %v2215
        %s2217 = sand.u32 %s141, 1
        %s2218 = scalar_lea.sflag [#allocation3], %s2217
        %s2219 = sand.u32 %s141, 1
        %s2220 = smul.addr %s2219, 8
        %s2221 = scalar_lea.vmem [#allocation2], %s2220
        // Predicated region
        $region37: #{tpu_custom_call.1} parent=31 // pred_check
          %p2222 = pneg %p151
        $region38: #{tpu_custom_call.1} parent=31 // pred_check_branch
          %2224 = sbr.rel (%p2222) target = $region40
        $region39: #{tpu_custom_call.1} parent=31 // pred_region
          %s2226 = ssub.s32 128, 128
          %2227 = vsyncadd %s2218, %s2226
          %s2228 = sadd.s32 %s25, %s24
          %s2229 = smul.addr %s23, 2
          %s2230 = sadd.s32 %s2228, %s2229
          %s2231 = smul.addr %s2230, 128
          %s2232 = scalar_lea.hbm %s3, %s2231
          %s2234 = sshll.u32 %s2221, 4
          %s2235 = int_to_ptr.vmem [resolvable:$true] %s2234
          %2237 = dma.vmem_to_hbm [thread:$0]  %s2235, 128, %s2232, %s2218
        $region40: #{tpu_custom_call.1} parent=31 // pred_fallthru
          _
      $region32: #{tpu_custom_call.1} parent=5 // pred_fallthru
        _
      %p2238 = scmp.le.s32.totalorder 2, %s12
      // Predicated region
      $region41: #{tpu_custom_call.1} parent=5 // pred_check
        %p2239 = pneg %p2238
      $region42: #{tpu_custom_call.1} parent=5 // pred_check_branch
        %2241 = sbr.rel (%p2239) target = $region44
      $region43: #{tpu_custom_call.1} parent=5 // pred_region
        %s2242 = ssub.s32 %s12, 2
        // Predicated region
        $region45: #{tpu_custom_call.1} parent=43 // pred_check
          %p2243 = pneg %p157
        $region46: #{tpu_custom_call.1} parent=43 // pred_check_branch
          %2245 = sbr.rel (%p2243) target = $region48
        $region47: #{tpu_custom_call.1} parent=43 // pred_region
          %s2246 = sand.u32 %s142, 1
          %s2247 = scalar_lea.sflag [#allocation3], %s2246
          %s2248 = sand.u32 %s142, 1
          %s2249 = smul.addr %s2248, 8
          %s2250 = scalar_lea.vmem [#allocation2], %s2249
          %2251 = dma.done %s2247, 128
        $region48: #{tpu_custom_call.1} parent=43 // pred_fallthru
          _
      $region44: #{tpu_custom_call.1} parent=5 // pred_fallthru
        _
    $region6: #{tpu_custom_call.1} parent=1 // loop_footer
      %s16 = sadd.s32 1, %s12
    $region7: #{tpu_custom_call.1} parent=1 // loop_footer_branch
      %11 = sbr.rel target = $region3
    $region8: #{tpu_custom_call.1} parent=1 // loop_exit
      _
    %2252 = vsyncpa [#allocation3], 1
    %s2253 = scalar_lea.sflag [#allocation3], 1
    %2254 = vsyncpa %s2253, 1

</llo_original>
